<compile_context>
chip_gen: v7x
topology: tpu7x:2x2x1
jax: 0.10.0
libtpu: 0.0.40
codegen_flags: <defaults>
</compile_context>

<pallas_src>
import jax
import jax.numpy as jnp
from jax.experimental import pallas as pl
from jax.experimental.pallas import tpu as pltpu


TILE_B = 128  # batch rows per grid step; fills MXU rows on all generations


def vae_kernel(x_ref, w1_ref, b1_ref, w2m_ref, b2m_ref, w2v_ref, b2v_ref,
               w3_ref, b3_ref, w4_ref, b4_ref,
               recon_ref, mu_ref, logvar_ref):
    """One batch tile of the VAE forward pass (eval mode)."""
    x = x_ref[...].astype(jnp.bfloat16)

    # ---- encoder ----
    h1 = jnp.dot(x, w1_ref[...], preferred_element_type=jnp.float32) + b1_ref[...]
    h1 = jnp.maximum(h1, 0.0)                       # ReLU (Dropout = identity in eval)
    h1 = h1.astype(jnp.bfloat16)

    # .view(-1, 2, F): columns [0:F] -> mu, [F:2F] -> log_var (weight pre-split).
    mu = jnp.dot(h1, w2m_ref[...], preferred_element_type=jnp.float32) + b2m_ref[...]
    log_var = jnp.dot(h1, w2v_ref[...], preferred_element_type=jnp.float32) + b2v_ref[...]

    # reparametrize() in eval mode: z == mu.
    z = mu.astype(jnp.bfloat16)

    # ---- decoder ----
    h2 = jnp.dot(z, w3_ref[...], preferred_element_type=jnp.float32) + b3_ref[...]
    h2 = jnp.maximum(h2, 0.0)                       # ReLU (Dropout = identity in eval)
    h2 = h2.astype(jnp.bfloat16)
    recon = jnp.tanh(
        jnp.dot(h2, w4_ref[...], preferred_element_type=jnp.float32) + b4_ref[...])

    recon_ref[...] = recon
    mu_ref[...] = mu
    logvar_ref[...] = log_var


def vae_forward(x, params):
    """Eval-mode VAE forward. Returns (reconstruction, mu, log_var, z)."""
    (w1, b1, w2, b2, w3, b3, w4, b4) = params
    B, input_dim = x.shape
    features = w3.shape[0]

    # Split the encoder head so mu / log_var are separate, lane-dense outputs.
    w2_mu, w2_lv = w2[:, :features], w2[:, features:]
    b2_mu, b2_lv = b2[:, :features], b2[:, features:]

    to_bf16 = lambda a: a.astype(jnp.bfloat16)
    w1b, w2mb, w2vb, w3b, w4b = map(to_bf16, (w1, w2_mu, w2_lv, w3, w4))

    # Pad batch to a multiple of the tile (second-to-last block dim must be a
    # multiple of 8 or equal to the full extent).
    tile_b = TILE_B if B >= TILE_B else max(8, -(-B // 8) * 8)
    b_pad = -(-B // tile_b) * tile_b
    if b_pad != B:
        x = jnp.pad(x, ((0, b_pad - B), (0, 0)))

    grid = (b_pad // tile_b,)

    def tiled(shape):
        return pl.BlockSpec(shape, lambda i: (i, 0))

    def resident(a):                     # weights/biases stay VMEM-resident
        return pl.BlockSpec(a.shape, lambda i: (0, 0))

    out_shapes = (
        jax.ShapeDtypeStruct((b_pad, input_dim), jnp.float32),   # reconstruction
        jax.ShapeDtypeStruct((b_pad, features), jnp.float32),    # mu
        jax.ShapeDtypeStruct((b_pad, features), jnp.float32),    # log_var
    )

    recon, mu, log_var = pl.pallas_call(
        vae_kernel,
        out_shape=out_shapes,
        grid=grid,
        in_specs=[
            tiled((tile_b, input_dim)),          # x
            resident(w1b), resident(b1),
            resident(w2mb), resident(b2_mu),
            resident(w2vb), resident(b2_lv),
            resident(w3b), resident(b3),
            resident(w4b), resident(b4),
        ],
        out_specs=(
            tiled((tile_b, input_dim)),
            tiled((tile_b, features)),
            tiled((tile_b, features)),
        ),
        compiler_params=pltpu.CompilerParams(
            dimension_semantics=("parallel",),
            vmem_limit_bytes=16 << 20,
        ),
    )(x, w1b, b1, w2mb, b2_mu, w2vb, b2_lv, w3b, b3, w4b, b4)

    if b_pad != B:
        recon, mu, log_var = recon[:B], mu[:B], log_var[:B]

    # z == mu in eval mode; avoid a redundant HBM writeback.
    return recon, mu, log_var, mu


def init_params(key, input_dim, mid_dim, features):
    """Deterministic synthetic parameters. Weights stored as [in, out], f32."""
    ks = jax.random.split(key, 8)

    def lin(kw, kb, fan_in, fan_out):
        bound = 1.0 / jnp.sqrt(fan_in)
        w = jax.random.uniform(kw, (fan_in, fan_out), jnp.float32, -bound, bound)
        b = jax.random.uniform(kb, (1, fan_out), jnp.float32, -bound, bound)
        return w, b

    w1, b1 = lin(ks[0], ks[1], input_dim, mid_dim)        # encoder linear 1
    w2, b2 = lin(ks[2], ks[3], mid_dim, 2 * features)     # encoder linear 2
    w3, b3 = lin(ks[4], ks[5], features, mid_dim)         # decoder linear 1
    w4, b4 = lin(ks[6], ks[7], mid_dim, input_dim)        # decoder linear 2
    return (w1, b1, w2, b2, w3, b3, w4, b4)


def vae_reference(x, params):
    """Pure-JAX reference (eval mode) with the same bf16-operand / f32-acc math."""
    (w1, b1, w2, b2, w3, b3, w4, b4) = params
    F = w3.shape[0]
    bf = jnp.bfloat16
    dot = lambda a, w: jnp.dot(a.astype(bf), w.astype(bf),
                               preferred_element_type=jnp.float32)
    h1 = jnp.maximum(dot(x, w1) + b1, 0.0)
    ml = dot(h1, w2) + b2
    mu, log_var = ml[:, :F], ml[:, F:]
    z = mu
    h2 = jnp.maximum(dot(z, w3) + b3, 0.0)
    recon = jnp.tanh(dot(h2, w4) + b4)
    return recon, mu, log_var, z


if __name__ == "__main__":
    B, INPUT_DIM, MID_DIM, FEATURES = 256, 256, 256, 128

    key = jax.random.PRNGKey(0)
    k_x, k_p = jax.random.split(key)
    x = jax.random.normal(k_x, (B, INPUT_DIM), jnp.float32)
    params = init_params(k_p, INPUT_DIM, MID_DIM, FEATURES)

    recon, mu, log_var, z = jax.block_until_ready(vae_forward(x, params))

    r_ref, mu_ref, lv_ref, z_ref = vae_reference(x, params)
    assert recon.shape == (B, INPUT_DIM) and mu.shape == (B, FEATURES)
    assert log_var.shape == (B, FEATURES) and z.shape == (B, FEATURES)
    assert jnp.allclose(recon, r_ref, atol=1e-2, rtol=1e-2)
    assert jnp.allclose(mu, mu_ref, atol=1e-2, rtol=1e-2)
    assert jnp.allclose(log_var, lv_ref, atol=1e-2, rtol=1e-2)
    assert jnp.allclose(z, z_ref, atol=1e-2, rtol=1e-2)

    print("KERNEL_OK")
</pallas_src>

<mosaic_0001>
module attributes {stable_mosaic.version = 11 : i64} {
  func.func @vae_kernel(%arg0: i32, %arg1: memref<128x256xf32, #tpu.memory_space<vmem>>, %arg2: memref<256x256xbf16, #tpu.memory_space<vmem>>, %arg3: memref<1x256xf32, #tpu.memory_space<vmem>>, %arg4: memref<256x128xbf16, #tpu.memory_space<vmem>>, %arg5: memref<1x128xf32, #tpu.memory_space<vmem>>, %arg6: memref<256x128xbf16, #tpu.memory_space<vmem>>, %arg7: memref<1x128xf32, #tpu.memory_space<vmem>>, %arg8: memref<128x256xbf16, #tpu.memory_space<vmem>>, %arg9: memref<1x256xf32, #tpu.memory_space<vmem>>, %arg10: memref<256x256xbf16, #tpu.memory_space<vmem>>, %arg11: memref<1x256xf32, #tpu.memory_space<vmem>>, %arg12: memref<128x256xf32, #tpu.memory_space<vmem>>, %arg13: memref<128x128xf32, #tpu.memory_space<vmem>>, %arg14: memref<128x128xf32, #tpu.memory_space<vmem>>) attributes {dimension_semantics = [#tpu.dimension_semantics<parallel>], iteration_bounds = array<i64: 2>, scalar_prefetch = 0 : i64, scratch_operands = 0 : i64, tpu.core_type = #tpu.core_type<tc>, window_params = [{transform_indices = @transform_0, window_bounds = array<i64: 128, 256>}, {pipeline_mode = #tpu.pipeline_mode<synchronous>, transform_indices = @transform_1, window_bounds = array<i64: 256, 256>}, {pipeline_mode = #tpu.pipeline_mode<synchronous>, transform_indices = @transform_2, window_bounds = array<i64: 1, 256>}, {pipeline_mode = #tpu.pipeline_mode<synchronous>, transform_indices = @transform_3, window_bounds = array<i64: 256, 128>}, {pipeline_mode = #tpu.pipeline_mode<synchronous>, transform_indices = @transform_4, window_bounds = array<i64: 1, 128>}, {pipeline_mode = #tpu.pipeline_mode<synchronous>, transform_indices = @transform_5, window_bounds = array<i64: 256, 128>}, {pipeline_mode = #tpu.pipeline_mode<synchronous>, transform_indices = @transform_6, window_bounds = array<i64: 1, 128>}, {pipeline_mode = #tpu.pipeline_mode<synchronous>, transform_indices = @transform_7, window_bounds = array<i64: 128, 256>}, {pipeline_mode = #tpu.pipeline_mode<synchronous>, transform_indices = @transform_8, window_bounds = array<i64: 1, 256>}, {pipeline_mode = #tpu.pipeline_mode<synchronous>, transform_indices = @transform_9, window_bounds = array<i64: 256, 256>}, {pipeline_mode = #tpu.pipeline_mode<synchronous>, transform_indices = @transform_10, window_bounds = array<i64: 1, 256>}, {transform_indices = @transform_11, window_bounds = array<i64: 128, 256>}, {transform_indices = @transform_12, window_bounds = array<i64: 128, 128>}, {transform_indices = @transform_13, window_bounds = array<i64: 128, 128>}]} {
    %c0 = arith.constant 0 : index
    %c0_0 = arith.constant 0 : index
    %0 = vector.load %arg1[%c0, %c0_0] : memref<128x256xf32, #tpu.memory_space<vmem>>, vector<128x256xf32>
    %1 = arith.truncf %0 : vector<128x256xf32> to vector<128x256xbf16>
    %c0_1 = arith.constant 0 : index
    %c0_2 = arith.constant 0 : index
    %2 = vector.load %arg2[%c0_1, %c0_2] : memref<256x256xbf16, #tpu.memory_space<vmem>>, vector<256x256xbf16>
    %cst = arith.constant dense<0.000000e+00> : vector<128x256xf32>
    %3 = tpu.matmul %1, %2, %cst {dimension_numbers = #tpu.dot_dimension_numbers<[1], [0], [0], [1], [0, 0, 1, 1], [], []>} : vector<128x256xbf16>, vector<256x256xbf16>, vector<128x256xf32> -> vector<128x256xf32>
    %c0_3 = arith.constant 0 : index
    %c0_4 = arith.constant 0 : index
    %4 = vector.load %arg3[%c0_3, %c0_4] : memref<1x256xf32, #tpu.memory_space<vmem>>, vector<1x256xf32>
    %5 = vector.broadcast %4 : vector<1x256xf32> to vector<128x256xf32>
    %6 = arith.addf %3, %5 : vector<128x256xf32>
    %cst_5 = arith.constant 0.000000e+00 : f32
    %7 = vector.broadcast %cst_5 : f32 to vector<128x256xf32>
    %8 = arith.maximumf %6, %7 : vector<128x256xf32>
    %9 = arith.truncf %8 : vector<128x256xf32> to vector<128x256xbf16>
    %c0_6 = arith.constant 0 : index
    %c0_7 = arith.constant 0 : index
    %10 = vector.load %arg4[%c0_6, %c0_7] : memref<256x128xbf16, #tpu.memory_space<vmem>>, vector<256x128xbf16>
    %cst_8 = arith.constant dense<0.000000e+00> : vector<128x128xf32>
    %11 = tpu.matmul %9, %10, %cst_8 {dimension_numbers = #tpu.dot_dimension_numbers<[1], [0], [0], [1], [0, 0, 1, 1], [], []>} : vector<128x256xbf16>, vector<256x128xbf16>, vector<128x128xf32> -> vector<128x128xf32>
    %c0_9 = arith.constant 0 : index
    %c0_10 = arith.constant 0 : index
    %12 = vector.load %arg5[%c0_9, %c0_10] : memref<1x128xf32, #tpu.memory_space<vmem>>, vector<1x128xf32>
    %13 = vector.broadcast %12 : vector<1x128xf32> to vector<128x128xf32>
    %14 = arith.addf %11, %13 : vector<128x128xf32>
    %c0_11 = arith.constant 0 : index
    %c0_12 = arith.constant 0 : index
    %15 = vector.load %arg6[%c0_11, %c0_12] : memref<256x128xbf16, #tpu.memory_space<vmem>>, vector<256x128xbf16>
    %cst_13 = arith.constant dense<0.000000e+00> : vector<128x128xf32>
    %16 = tpu.matmul %9, %15, %cst_13 {dimension_numbers = #tpu.dot_dimension_numbers<[1], [0], [0], [1], [0, 0, 1, 1], [], []>} : vector<128x256xbf16>, vector<256x128xbf16>, vector<128x128xf32> -> vector<128x128xf32>
    %c0_14 = arith.constant 0 : index
    %c0_15 = arith.constant 0 : index
    %17 = vector.load %arg7[%c0_14, %c0_15] : memref<1x128xf32, #tpu.memory_space<vmem>>, vector<1x128xf32>
    %18 = vector.broadcast %17 : vector<1x128xf32> to vector<128x128xf32>
    %19 = arith.addf %16, %18 : vector<128x128xf32>
    %20 = arith.truncf %14 : vector<128x128xf32> to vector<128x128xbf16>
    %c0_16 = arith.constant 0 : index
    %c0_17 = arith.constant 0 : index
    %21 = vector.load %arg8[%c0_16, %c0_17] : memref<128x256xbf16, #tpu.memory_space<vmem>>, vector<128x256xbf16>
    %cst_18 = arith.constant dense<0.000000e+00> : vector<128x256xf32>
    %22 = tpu.matmul %20, %21, %cst_18 {dimension_numbers = #tpu.dot_dimension_numbers<[1], [0], [0], [1], [0, 0, 1, 1], [], []>} : vector<128x128xbf16>, vector<128x256xbf16>, vector<128x256xf32> -> vector<128x256xf32>
    %c0_19 = arith.constant 0 : index
    %c0_20 = arith.constant 0 : index
    %23 = vector.load %arg9[%c0_19, %c0_20] : memref<1x256xf32, #tpu.memory_space<vmem>>, vector<1x256xf32>
    %24 = vector.broadcast %23 : vector<1x256xf32> to vector<128x256xf32>
    %25 = arith.addf %22, %24 : vector<128x256xf32>
    %cst_21 = arith.constant 0.000000e+00 : f32
    %26 = vector.broadcast %cst_21 : f32 to vector<128x256xf32>
    %27 = arith.maximumf %25, %26 : vector<128x256xf32>
    %28 = arith.truncf %27 : vector<128x256xf32> to vector<128x256xbf16>
    %c0_22 = arith.constant 0 : index
    %c0_23 = arith.constant 0 : index
    %29 = vector.load %arg10[%c0_22, %c0_23] : memref<256x256xbf16, #tpu.memory_space<vmem>>, vector<256x256xbf16>
    %cst_24 = arith.constant dense<0.000000e+00> : vector<128x256xf32>
    %30 = tpu.matmul %28, %29, %cst_24 {dimension_numbers = #tpu.dot_dimension_numbers<[1], [0], [0], [1], [0, 0, 1, 1], [], []>} : vector<128x256xbf16>, vector<256x256xbf16>, vector<128x256xf32> -> vector<128x256xf32>
    %c0_25 = arith.constant 0 : index
    %c0_26 = arith.constant 0 : index
    %31 = vector.load %arg11[%c0_25, %c0_26] : memref<1x256xf32, #tpu.memory_space<vmem>>, vector<1x256xf32>
    %32 = vector.broadcast %31 : vector<1x256xf32> to vector<128x256xf32>
    %33 = arith.addf %30, %32 : vector<128x256xf32>
    %34 = math.tanh %33 : vector<128x256xf32>
    %c0_27 = arith.constant 0 : index
    %c0_28 = arith.constant 0 : index
    %35 = vector.load %arg12[%c0_27, %c0_28] : memref<128x256xf32, #tpu.memory_space<vmem>>, vector<128x256xf32>
    tpu.vector_store %arg12[%c0_27, %c0_28], %34 {strides = array<i32>} : memref<128x256xf32, #tpu.memory_space<vmem>>, vector<128x256xf32>,
    %c0_29 = arith.constant 0 : index
    %c0_30 = arith.constant 0 : index
    %36 = vector.load %arg13[%c0_29, %c0_30] : memref<128x128xf32, #tpu.memory_space<vmem>>, vector<128x128xf32>
    tpu.vector_store %arg13[%c0_29, %c0_30], %14 {strides = array<i32>} : memref<128x128xf32, #tpu.memory_space<vmem>>, vector<128x128xf32>,
    %c0_31 = arith.constant 0 : index
    %c0_32 = arith.constant 0 : index
    %37 = vector.load %arg14[%c0_31, %c0_32] : memref<128x128xf32, #tpu.memory_space<vmem>>, vector<128x128xf32>
    tpu.vector_store %arg14[%c0_31, %c0_32], %19 {strides = array<i32>} : memref<128x128xf32, #tpu.memory_space<vmem>>, vector<128x128xf32>,
    return
  }
  func.func @transform_0(%arg0: i32) -> (i32, i32) {
    %c0_i32 = arith.constant 0 : i32
    %c0_i32_0 = arith.constant 0 : i32
    return %arg0, %c0_i32 : i32, i32
  }
  func.func @transform_1(%arg0: i32) -> (i32, i32) {
    %c0_i32 = arith.constant 0 : i32
    %c0_i32_0 = arith.constant 0 : i32
    %c0_i32_1 = arith.constant 0 : i32
    return %c0_i32, %c0_i32_0 : i32, i32
  }
  func.func @transform_2(%arg0: i32) -> (i32, i32) {
    %c0_i32 = arith.constant 0 : i32
    %c0_i32_0 = arith.constant 0 : i32
    %c0_i32_1 = arith.constant 0 : i32
    return %c0_i32, %c0_i32_0 : i32, i32
  }
  func.func @transform_3(%arg0: i32) -> (i32, i32) {
    %c0_i32 = arith.constant 0 : i32
    %c0_i32_0 = arith.constant 0 : i32
    %c0_i32_1 = arith.constant 0 : i32
    return %c0_i32, %c0_i32_0 : i32, i32
  }
  func.func @transform_4(%arg0: i32) -> (i32, i32) {
    %c0_i32 = arith.constant 0 : i32
    %c0_i32_0 = arith.constant 0 : i32
    %c0_i32_1 = arith.constant 0 : i32
    return %c0_i32, %c0_i32_0 : i32, i32
  }
  func.func @transform_5(%arg0: i32) -> (i32, i32) {
    %c0_i32 = arith.constant 0 : i32
    %c0_i32_0 = arith.constant 0 : i32
    %c0_i32_1 = arith.constant 0 : i32
    return %c0_i32, %c0_i32_0 : i32, i32
  }
  func.func @transform_6(%arg0: i32) -> (i32, i32) {
    %c0_i32 = arith.constant 0 : i32
    %c0_i32_0 = arith.constant 0 : i32
    %c0_i32_1 = arith.constant 0 : i32
    return %c0_i32, %c0_i32_0 : i32, i32
  }
  func.func @transform_7(%arg0: i32) -> (i32, i32) {
    %c0_i32 = arith.constant 0 : i32
    %c0_i32_0 = arith.constant 0 : i32
    %c0_i32_1 = arith.constant 0 : i32
    return %c0_i32, %c0_i32_0 : i32, i32
  }
  func.func @transform_8(%arg0: i32) -> (i32, i32) {
    %c0_i32 = arith.constant 0 : i32
    %c0_i32_0 = arith.constant 0 : i32
    %c0_i32_1 = arith.constant 0 : i32
    return %c0_i32, %c0_i32_0 : i32, i32
  }
  func.func @transform_9(%arg0: i32) -> (i32, i32) {
    %c0_i32 = arith.constant 0 : i32
    %c0_i32_0 = arith.constant 0 : i32
    %c0_i32_1 = arith.constant 0 : i32
    return %c0_i32, %c0_i32_0 : i32, i32
  }
  func.func @transform_10(%arg0: i32) -> (i32, i32) {
    %c0_i32 = arith.constant 0 : i32
    %c0_i32_0 = arith.constant 0 : i32
    %c0_i32_1 = arith.constant 0 : i32
    return %c0_i32, %c0_i32_0 : i32, i32
  }
  func.func @transform_11(%arg0: i32) -> (i32, i32) {
    %c0_i32 = arith.constant 0 : i32
    %c0_i32_0 = arith.constant 0 : i32
    return %arg0, %c0_i32 : i32, i32
  }
  func.func @transform_12(%arg0: i32) -> (i32, i32) {
    %c0_i32 = arith.constant 0 : i32
    %c0_i32_0 = arith.constant 0 : i32
    return %arg0, %c0_i32 : i32, i32
  }
  func.func @transform_13(%arg0: i32) -> (i32, i32) {
    %c0_i32 = arith.constant 0 : i32
    %c0_i32_0 = arith.constant 0 : i32
    return %arg0, %c0_i32 : i32, i32
  }
}

</mosaic_0001>

<llo_original>
// kernel: tpu_custom_call.1
$region0: #{tpu_custom_call.1}
  #allocation0 [shape = 'u32[]', space=smem, size = 0x4, offset = 0x4, fixed_abs, tag = 'smem constant byte address 0x4 - core index']
  #allocation1 [shape = 'u32[144,128]{1,0:T(1,128)}', space=vmem, size = 0x12000, scoped, tag = 'internal scratch']
  %s0 = inlined_call_operand.hbm [shape: f32[256,256], index: 0, kind: input, shape index: {}]
  %s1 = inlined_call_operand.hbm [shape: bf16[256,256], index: 1, kind: input, shape index: {}]
  %s2 = inlined_call_operand.vmem [shape: f32[1,256], index: 2, kind: input, shape index: {}]
  %s3 = inlined_call_operand.hbm [shape: bf16[256,128], index: 3, kind: input, shape index: {}]
  %s4 = inlined_call_operand.vmem [shape: f32[1,128], index: 4, kind: input, shape index: {}]
  %s5 = inlined_call_operand.hbm [shape: bf16[256,128], index: 5, kind: input, shape index: {}]
  %s6 = inlined_call_operand.vmem [shape: f32[1,128], index: 6, kind: input, shape index: {}]
  %s7 = inlined_call_operand.hbm [shape: bf16[128,256], index: 7, kind: input, shape index: {}]
  %s8 = inlined_call_operand.vmem [shape: f32[1,256], index: 8, kind: input, shape index: {}]
  %s9 = inlined_call_operand.hbm [shape: bf16[256,256], index: 9, kind: input, shape index: {}]
  %s10 = inlined_call_operand.vmem [shape: f32[1,256], index: 10, kind: input, shape index: {}]
  %s11 = inlined_call_operand.hbm [shape: f32[256,256], index: 11, kind: output, shape index: {0}]
  %s12 = inlined_call_operand.hbm [shape: f32[256,128], index: 12, kind: output, shape index: {1}]
  %s13 = inlined_call_operand.hbm [shape: f32[256,128], index: 13, kind: output, shape index: {2}]
  %14 = xla_tuple %s11, %s12, %s13
  %s15 = sld [smem:[#allocation0]]
  $region117: #{tpu_custom_call.1} parent=0
    _
  %s17 = ssub.s32 1, %s15
  %s18 = scalar_select 0, %s17, %s15
  $region1: #{tpu_custom_call.1} parent=0
    #allocation2 [shape = 'u8[262144]{0}', space=vmem, size = 0x40000, scoped, tag = 'input window, operand 0']
    #allocation3 [shape = 's32[2]{0}', space=sflag, size = 0x8, scoped, tag = 'scoped memory for tpu_custom_call.1']
    #allocation4 [shape = 's32[2]{0}', space=sflag, size = 0x8, scoped, tag = 'scoped memory for tpu_custom_call.1']
    #allocation5 [shape = 'u8[131072]{0}', space=vmem, size = 0x20000, scoped, tag = 'input window, operand 1, single buffered']
    #allocation6 [shape = 's32[1]{0}', space=sflag, size = 0x4, scoped, tag = 'scoped memory for tpu_custom_call.1']
    #allocation7 [shape = 'u8[65536]{0}', space=vmem, size = 0x10000, scoped, tag = 'input window, operand 3, single buffered']
    #allocation8 [shape = 'u8[65536]{0}', space=vmem, size = 0x10000, scoped, tag = 'input window, operand 5, single buffered']
    #allocation9 [shape = 's32[1]{0}', space=sflag, size = 0x4, scoped, tag = 'scoped memory for tpu_custom_call.1']
    #allocation10 [shape = 'u8[65536]{0}', space=vmem, size = 0x10000, scoped, tag = 'input window, operand 7, single buffered']
    #allocation11 [shape = 'u8[131072]{0}', space=vmem, size = 0x20000, scoped, tag = 'input window, operand 9, single buffered']
    #allocation12 [shape = 's32[1]{0}', space=sflag, size = 0x4, scoped, tag = 'scoped memory for tpu_custom_call.1']
    #allocation13 [shape = 'u8[262144]{0}', space=vmem, size = 0x40000, scoped, tag = 'output window, operand 0']
    #allocation14 [shape = 'u8[131072]{0}', space=vmem, size = 0x20000, scoped, tag = 'output window, operand 1']
    #allocation15 [shape = 's32[2]{0}', space=sflag, size = 0x8, scoped, tag = 'scoped memory for tpu_custom_call.1']
    #allocation16 [shape = 'u8[131072]{0}', space=vmem, size = 0x20000, scoped, tag = 'output window, operand 2']
    %19 = vsyncpa [#allocation3], 0
    %s20 = scalar_lea.sflag [#allocation3], 1
    %21 = vsyncpa %s20, 0
    %22 = vsyncpa [#allocation6], 0
    %23 = vsyncpa [#allocation9], 0
    %24 = vsyncpa [#allocation12], 0
    %25 = vsyncpa [#allocation4], 0
    %s26 = scalar_lea.sflag [#allocation4], 1
    %27 = vsyncpa %s26, 0
    %28 = vsyncpa [#allocation15], 0
    %s29 = scalar_lea.sflag [#allocation15], 1
    %30 = vsyncpa %s29, 0
    loop: start=0, step=1, limit=4
    $region2: #{tpu_custom_call.1} parent=1 // loop_pre_header
      _
    $region3: #{tpu_custom_call.1} parent=1 // loop_header
      %s32 = sphi 0, %s36
      %p33 = scmp.ge.s32.totalorder %s32, 4
      %s42 = sphi 0, %s44
      %s45 = sphi 0, %s42
      %s46 = sphi 0, %s45
      %s62 = sphi 0, %s46
      %s66 = sphi 0, %s66
      %s68 = sphi 0, %s66
      %s69 = sphi 0, %s68
      %s83 = sphi 0, %s69
      %s87 = sphi 0, %s87
      %s89 = sphi 0, %s87
      %s90 = sphi 0, %s89
      %s104 = sphi 0, %s90
      %s108 = sphi 0, %s108
      %s110 = sphi 0, %s108
      %s111 = sphi 0, %s110
      %s125 = sphi 0, %s111
      %s129 = sphi 0, %s129
      %s131 = sphi 0, %s129
      %s132 = sphi 0, %s131
      %s146 = sphi 0, %s132
      %s150 = sphi 0, %s150
      %s152 = sphi 0, %s150
      %s153 = sphi 0, %s152
      %s167 = sphi 0, %s153
      %s171 = sphi 0, %s171
      %s173 = sphi 0, %s171
      %s174 = sphi 0, %s173
      %s188 = sphi 0, %s174
      %s192 = sphi 0, %s192
      %s194 = sphi 0, %s192
      %s195 = sphi 0, %s194
      %s209 = sphi 0, %s195
      %s213 = sphi 0, %s213
      %s215 = sphi 0, %s213
      %s216 = sphi 0, %s215
      %s230 = sphi 0, %s216
      %s234 = sphi 0, %s234
      %s236 = sphi 0, %s234
      %s237 = sphi 0, %s236
      %s251 = sphi 0, %s237
      %s255 = sphi 0, %s255
      %s257 = sphi 0, %s255
      %s258 = sphi 0, %s257
      %s272 = sphi 0, %s258
      %s278 = sphi 0, %s280
      %s281 = sphi 0, %s278
      %s282 = sphi 0, %s281
      %s298 = sphi 0, %s282
      %s304 = sphi 0, %s306
      %s307 = sphi 0, %s304
      %s308 = sphi 0, %s307
      %s324 = sphi 0, %s308
      %s330 = sphi 0, %s332
      %s333 = sphi 0, %s330
      %s334 = sphi 0, %s333
      %s350 = sphi 0, %s334
    $region4: #{tpu_custom_call.1} parent=1 // loop_header_branch
      %35 = sbr.rel (%p33) target = $region8
    $region5: #{tpu_custom_call.1} parent=1 // loop_body
      %s37 = ssub.s32 %s32, 1
      %s38 = ssub.s32 %s32, 2
      %s39 = sadd.s32 %s32, 1
      %s40 = ssub.s32 %s32, %s39
      %p41 = scmp.eq.s32.totalorder %s40, 0
      %s43 = sadd.s32 %s42, 1
      %s44 = scalar_select %p41, %s42, %s43
      %p47 = pneg %p41
      %p48 = scmp.eq.s32.totalorder %s32, 1
      %p49 = por %p47, %p48
      %p50 = scmp.ne.s32.totalorder %s42, %s45
      %p51 = scmp.eq.s32.totalorder %s32, 0
      %p52 = por %p50, %p51
      %p53 = scmp.ne.s32.totalorder %s42, %s45
      %p54 = scmp.eq.s32.totalorder %s37, 1
      %p55 = por %p53, %p54
      %p56 = scmp.ne.s32.totalorder %s45, %s46
      %p57 = scmp.eq.s32.totalorder %s37, 0
      %p58 = por %p56, %p57
      %p59 = scmp.ne.s32.totalorder %s45, %s46
      %p60 = scmp.eq.s32.totalorder %s38, 1
      %p61 = por %p59, %p60
      %p63 = scmp.ne.s32.totalorder %s46, %s62
      %p64 = scmp.eq.s32.totalorder %s38, 0
      %p65 = por %p63, %p64
      %s67 = sadd.s32 %s66, 1
      %p70 = scmp.eq.s32.totalorder %s32, 1
      %p71 = scmp.ne.s32.totalorder %s66, %s68
      %p72 = scmp.eq.s32.totalorder %s32, 0
      %p73 = por %p71, %p72
      %p74 = scmp.ne.s32.totalorder %s66, %s68
      %p75 = scmp.eq.s32.totalorder %s37, 1
      %p76 = por %p74, %p75
      %p77 = scmp.ne.s32.totalorder %s68, %s69
      %p78 = scmp.eq.s32.totalorder %s37, 0
      %p79 = por %p77, %p78
      %p80 = scmp.ne.s32.totalorder %s68, %s69
      %p81 = scmp.eq.s32.totalorder %s38, 1
      %p82 = por %p80, %p81
      %p84 = scmp.ne.s32.totalorder %s69, %s83
      %p85 = scmp.eq.s32.totalorder %s38, 0
      %p86 = por %p84, %p85
      %s88 = sadd.s32 %s87, 1
      %p91 = scmp.eq.s32.totalorder %s32, 1
      %p92 = scmp.ne.s32.totalorder %s87, %s89
      %p93 = scmp.eq.s32.totalorder %s32, 0
      %p94 = por %p92, %p93
      %p95 = scmp.ne.s32.totalorder %s87, %s89
      %p96 = scmp.eq.s32.totalorder %s37, 1
      %p97 = por %p95, %p96
      %p98 = scmp.ne.s32.totalorder %s89, %s90
      %p99 = scmp.eq.s32.totalorder %s37, 0
      %p100 = por %p98, %p99
      %p101 = scmp.ne.s32.totalorder %s89, %s90
      %p102 = scmp.eq.s32.totalorder %s38, 1
      %p103 = por %p101, %p102
      %p105 = scmp.ne.s32.totalorder %s90, %s104
      %p106 = scmp.eq.s32.totalorder %s38, 0
      %p107 = por %p105, %p106
      %s109 = sadd.s32 %s108, 1
      %p112 = scmp.eq.s32.totalorder %s32, 1
      %p113 = scmp.ne.s32.totalorder %s108, %s110
      %p114 = scmp.eq.s32.totalorder %s32, 0
      %p115 = por %p113, %p114
      %p116 = scmp.ne.s32.totalorder %s108, %s110
      %p117 = scmp.eq.s32.totalorder %s37, 1
      %p118 = por %p116, %p117
      %p119 = scmp.ne.s32.totalorder %s110, %s111
      %p120 = scmp.eq.s32.totalorder %s37, 0
      %p121 = por %p119, %p120
      %p122 = scmp.ne.s32.totalorder %s110, %s111
      %p123 = scmp.eq.s32.totalorder %s38, 1
      %p124 = por %p122, %p123
      %p126 = scmp.ne.s32.totalorder %s111, %s125
      %p127 = scmp.eq.s32.totalorder %s38, 0
      %p128 = por %p126, %p127
      %s130 = sadd.s32 %s129, 1
      %p133 = scmp.eq.s32.totalorder %s32, 1
      %p134 = scmp.ne.s32.totalorder %s129, %s131
      %p135 = scmp.eq.s32.totalorder %s32, 0
      %p136 = por %p134, %p135
      %p137 = scmp.ne.s32.totalorder %s129, %s131
      %p138 = scmp.eq.s32.totalorder %s37, 1
      %p139 = por %p137, %p138
      %p140 = scmp.ne.s32.totalorder %s131, %s132
      %p141 = scmp.eq.s32.totalorder %s37, 0
      %p142 = por %p140, %p141
      %p143 = scmp.ne.s32.totalorder %s131, %s132
      %p144 = scmp.eq.s32.totalorder %s38, 1
      %p145 = por %p143, %p144
      %p147 = scmp.ne.s32.totalorder %s132, %s146
      %p148 = scmp.eq.s32.totalorder %s38, 0
      %p149 = por %p147, %p148
      %s151 = sadd.s32 %s150, 1
      %p154 = scmp.eq.s32.totalorder %s32, 1
      %p155 = scmp.ne.s32.totalorder %s150, %s152
      %p156 = scmp.eq.s32.totalorder %s32, 0
      %p157 = por %p155, %p156
      %p158 = scmp.ne.s32.totalorder %s150, %s152
      %p159 = scmp.eq.s32.totalorder %s37, 1
      %p160 = por %p158, %p159
      %p161 = scmp.ne.s32.totalorder %s152, %s153
      %p162 = scmp.eq.s32.totalorder %s37, 0
      %p163 = por %p161, %p162
      %p164 = scmp.ne.s32.totalorder %s152, %s153
      %p165 = scmp.eq.s32.totalorder %s38, 1
      %p166 = por %p164, %p165
      %p168 = scmp.ne.s32.totalorder %s153, %s167
      %p169 = scmp.eq.s32.totalorder %s38, 0
      %p170 = por %p168, %p169
      %s172 = sadd.s32 %s171, 1
      %p175 = scmp.eq.s32.totalorder %s32, 1
      %p176 = scmp.ne.s32.totalorder %s171, %s173
      %p177 = scmp.eq.s32.totalorder %s32, 0
      %p178 = por %p176, %p177
      %p179 = scmp.ne.s32.totalorder %s171, %s173
      %p180 = scmp.eq.s32.totalorder %s37, 1
      %p181 = por %p179, %p180
      %p182 = scmp.ne.s32.totalorder %s173, %s174
      %p183 = scmp.eq.s32.totalorder %s37, 0
      %p184 = por %p182, %p183
      %p185 = scmp.ne.s32.totalorder %s173, %s174
      %p186 = scmp.eq.s32.totalorder %s38, 1
      %p187 = por %p185, %p186
      %p189 = scmp.ne.s32.totalorder %s174, %s188
      %p190 = scmp.eq.s32.totalorder %s38, 0
      %p191 = por %p189, %p190
      %s193 = sadd.s32 %s192, 1
      %p196 = scmp.eq.s32.totalorder %s32, 1
      %p197 = scmp.ne.s32.totalorder %s192, %s194
      %p198 = scmp.eq.s32.totalorder %s32, 0
      %p199 = por %p197, %p198
      %p200 = scmp.ne.s32.totalorder %s192, %s194
      %p201 = scmp.eq.s32.totalorder %s37, 1
      %p202 = por %p200, %p201
      %p203 = scmp.ne.s32.totalorder %s194, %s195
      %p204 = scmp.eq.s32.totalorder %s37, 0
      %p205 = por %p203, %p204
      %p206 = scmp.ne.s32.totalorder %s194, %s195
      %p207 = scmp.eq.s32.totalorder %s38, 1
      %p208 = por %p206, %p207
      %p210 = scmp.ne.s32.totalorder %s195, %s209
      %p211 = scmp.eq.s32.totalorder %s38, 0
      %p212 = por %p210, %p211
      %s214 = sadd.s32 %s213, 1
      %p217 = scmp.eq.s32.totalorder %s32, 1
      %p218 = scmp.ne.s32.totalorder %s213, %s215
      %p219 = scmp.eq.s32.totalorder %s32, 0
      %p220 = por %p218, %p219
      %p221 = scmp.ne.s32.totalorder %s213, %s215
      %p222 = scmp.eq.s32.totalorder %s37, 1
      %p223 = por %p221, %p222
      %p224 = scmp.ne.s32.totalorder %s215, %s216
      %p225 = scmp.eq.s32.totalorder %s37, 0
      %p226 = por %p224, %p225
      %p227 = scmp.ne.s32.totalorder %s215, %s216
      %p228 = scmp.eq.s32.totalorder %s38, 1
      %p229 = por %p227, %p228
      %p231 = scmp.ne.s32.totalorder %s216, %s230
      %p232 = scmp.eq.s32.totalorder %s38, 0
      %p233 = por %p231, %p232
      %s235 = sadd.s32 %s234, 1
      %p238 = scmp.eq.s32.totalorder %s32, 1
      %p239 = scmp.ne.s32.totalorder %s234, %s236
      %p240 = scmp.eq.s32.totalorder %s32, 0
      %p241 = por %p239, %p240
      %p242 = scmp.ne.s32.totalorder %s234, %s236
      %p243 = scmp.eq.s32.totalorder %s37, 1
      %p244 = por %p242, %p243
      %p245 = scmp.ne.s32.totalorder %s236, %s237
      %p246 = scmp.eq.s32.totalorder %s37, 0
      %p247 = por %p245, %p246
      %p248 = scmp.ne.s32.totalorder %s236, %s237
      %p249 = scmp.eq.s32.totalorder %s38, 1
      %p250 = por %p248, %p249
      %p252 = scmp.ne.s32.totalorder %s237, %s251
      %p253 = scmp.eq.s32.totalorder %s38, 0
      %p254 = por %p252, %p253
      %s256 = sadd.s32 %s255, 1
      %p259 = scmp.eq.s32.totalorder %s32, 1
      %p260 = scmp.ne.s32.totalorder %s255, %s257
      %p261 = scmp.eq.s32.totalorder %s32, 0
      %p262 = por %p260, %p261
      %p263 = scmp.ne.s32.totalorder %s255, %s257
      %p264 = scmp.eq.s32.totalorder %s37, 1
      %p265 = por %p263, %p264
      %p266 = scmp.ne.s32.totalorder %s257, %s258
      %p267 = scmp.eq.s32.totalorder %s37, 0
      %p268 = por %p266, %p267
      %p269 = scmp.ne.s32.totalorder %s257, %s258
      %p270 = scmp.eq.s32.totalorder %s38, 1
      %p271 = por %p269, %p270
      %p273 = scmp.ne.s32.totalorder %s258, %s272
      %p274 = scmp.eq.s32.totalorder %s38, 0
      %p275 = por %p273, %p274
      %s276 = ssub.s32 %s32, %s39
      %p277 = scmp.eq.s32.totalorder %s276, 0
      %s279 = sadd.s32 %s278, 1
      %s280 = scalar_select %p277, %s278, %s279
      %p283 = pneg %p277
      %p284 = scmp.eq.s32.totalorder %s32, 1
      %p285 = por %p283, %p284
      %p286 = scmp.ne.s32.totalorder %s278, %s281
      %p287 = scmp.eq.s32.totalorder %s32, 0
      %p288 = por %p286, %p287
      %p289 = scmp.ne.s32.totalorder %s278, %s281
      %p290 = scmp.eq.s32.totalorder %s37, 1
      %p291 = por %p289, %p290
      %p292 = scmp.ne.s32.totalorder %s281, %s282
      %p293 = scmp.eq.s32.totalorder %s37, 0
      %p294 = por %p292, %p293
      %p295 = scmp.ne.s32.totalorder %s281, %s282
      %p296 = scmp.eq.s32.totalorder %s38, 1
      %p297 = por %p295, %p296
      %p299 = scmp.ne.s32.totalorder %s282, %s298
      %p300 = scmp.eq.s32.totalorder %s38, 0
      %p301 = por %p299, %p300
      %s302 = ssub.s32 %s32, %s39
      %p303 = scmp.eq.s32.totalorder %s302, 0
      %s305 = sadd.s32 %s304, 1
      %s306 = scalar_select %p303, %s304, %s305
      %p309 = pneg %p303
      %p310 = scmp.eq.s32.totalorder %s32, 1
      %p311 = por %p309, %p310
      %p312 = scmp.ne.s32.totalorder %s304, %s307
      %p313 = scmp.eq.s32.totalorder %s32, 0
      %p314 = por %p312, %p313
      %p315 = scmp.ne.s32.totalorder %s304, %s307
      %p316 = scmp.eq.s32.totalorder %s37, 1
      %p317 = por %p315, %p316
      %p318 = scmp.ne.s32.totalorder %s307, %s308
      %p319 = scmp.eq.s32.totalorder %s37, 0
      %p320 = por %p318, %p319
      %p321 = scmp.ne.s32.totalorder %s307, %s308
      %p322 = scmp.eq.s32.totalorder %s38, 1
      %p323 = por %p321, %p322
      %p325 = scmp.ne.s32.totalorder %s308, %s324
      %p326 = scmp.eq.s32.totalorder %s38, 0
      %p327 = por %p325, %p326
      %s328 = ssub.s32 %s32, %s39
      %p329 = scmp.eq.s32.totalorder %s328, 0
      %s331 = sadd.s32 %s330, 1
      %s332 = scalar_select %p329, %s330, %s331
      %p335 = pneg %p329
      %p336 = scmp.eq.s32.totalorder %s32, 1
      %p337 = por %p335, %p336
      %p338 = scmp.ne.s32.totalorder %s330, %s333
      %p339 = scmp.eq.s32.totalorder %s32, 0
      %p340 = por %p338, %p339
      %p341 = scmp.ne.s32.totalorder %s330, %s333
      %p342 = scmp.eq.s32.totalorder %s37, 1
      %p343 = por %p341, %p342
      %p344 = scmp.ne.s32.totalorder %s333, %s334
      %p345 = scmp.eq.s32.totalorder %s37, 0
      %p346 = por %p344, %p345
      %p347 = scmp.ne.s32.totalorder %s333, %s334
      %p348 = scmp.eq.s32.totalorder %s38, 1
      %p349 = por %p347, %p348
      %p351 = scmp.ne.s32.totalorder %s334, %s350
      %p352 = scmp.eq.s32.totalorder %s38, 0
      %p353 = por %p351, %p352
      %p354 = scmp.le.s32.totalorder 1, %s32
      %p355 = scmp.lt.s32.totalorder %s32, 3
      %p356 = pnand %p354, %p355
      %p357 = pneg %p356
      // Predicated region
      $region9: #{tpu_custom_call.1} parent=5 // pred_check
        _
      $region10: #{tpu_custom_call.1} parent=5 // pred_check_branch
        %359 = sbr.rel (%p356) target = $region12
      $region11: #{tpu_custom_call.1} parent=5 // pred_region
        %s360 = ssub.s32 %s32, 1
        // Predicated region
        $region13: #{tpu_custom_call.1} parent=11 // pred_check
          %p361 = pneg %p79
        $region14: #{tpu_custom_call.1} parent=11 // pred_check_branch
          %363 = sbr.rel (%p361) target = $region16
        $region15: #{tpu_custom_call.1} parent=11 // pred_region
          %s365 = ssub.s32 4096, 4096
          %366 = vsyncadd [#allocation6], %s365
          %s367 = sshll.u32 [#allocation5], 4
          %s368 = int_to_ptr.vmem [resolvable:$true] %s367
          %373 = dma.hbm_to_vmem [thread:$0]  %s1, 4096, %s368, [#allocation6], 128, 128, 8
        $region16: #{tpu_custom_call.1} parent=11 // pred_fallthru
          _
        // Predicated region
        $region17: #{tpu_custom_call.1} parent=11 // pred_check
          %p374 = pneg %p100
        $region18: #{tpu_custom_call.1} parent=11 // pred_check_branch
          %376 = sbr.rel (%p374) target = $region20
        $region19: #{tpu_custom_call.1} parent=11 // pred_region
          _
        $region20: #{tpu_custom_call.1} parent=11 // pred_fallthru
          _
        // Predicated region
        $region21: #{tpu_custom_call.1} parent=11 // pred_check
          %p377 = pneg %p121
        $region22: #{tpu_custom_call.1} parent=11 // pred_check_branch
          %379 = sbr.rel (%p377) target = $region24
        $region23: #{tpu_custom_call.1} parent=11 // pred_region
          %s381 = ssub.s32 2048, 2048
          %382 = vsyncadd [#allocation6], %s381
          %s383 = sshll.u32 [#allocation7], 4
          %s384 = int_to_ptr.vmem [resolvable:$true] %s383
          %389 = dma.hbm_to_vmem [thread:$0]  %s3, 2048, %s384, [#allocation6], 64, 64, 4
        $region24: #{tpu_custom_call.1} parent=11 // pred_fallthru
          _
        // Predicated region
        $region25: #{tpu_custom_call.1} parent=11 // pred_check
          %p390 = pneg %p142
        $region26: #{tpu_custom_call.1} parent=11 // pred_check_branch
          %392 = sbr.rel (%p390) target = $region28
        $region27: #{tpu_custom_call.1} parent=11 // pred_region
          _
        $region28: #{tpu_custom_call.1} parent=11 // pred_fallthru
          _
        // Predicated region
        $region29: #{tpu_custom_call.1} parent=11 // pred_check
          %p393 = pneg %p163
        $region30: #{tpu_custom_call.1} parent=11 // pred_check_branch
          %395 = sbr.rel (%p393) target = $region32
        $region31: #{tpu_custom_call.1} parent=11 // pred_region
          %s397 = ssub.s32 2048, 2048
          %398 = vsyncadd [#allocation9], %s397
          %s399 = sshll.u32 [#allocation8], 4
          %s400 = int_to_ptr.vmem [resolvable:$true] %s399
          %405 = dma.hbm_to_vmem [thread:$0]  %s5, 2048, %s400, [#allocation9], 64, 64, 4
        $region32: #{tpu_custom_call.1} parent=11 // pred_fallthru
          _
        // Predicated region
        $region33: #{tpu_custom_call.1} parent=11 // pred_check
          %p406 = pneg %p184
        $region34: #{tpu_custom_call.1} parent=11 // pred_check_branch
          %408 = sbr.rel (%p406) target = $region36
        $region35: #{tpu_custom_call.1} parent=11 // pred_region
          _
        $region36: #{tpu_custom_call.1} parent=11 // pred_fallthru
          _
        // Predicated region
        $region37: #{tpu_custom_call.1} parent=11 // pred_check
          %p409 = pneg %p205
        $region38: #{tpu_custom_call.1} parent=11 // pred_check_branch
          %411 = sbr.rel (%p409) target = $region40
        $region39: #{tpu_custom_call.1} parent=11 // pred_region
          %s413 = ssub.s32 2048, 2048
          %414 = vsyncadd [#allocation9], %s413
          %s415 = sshll.u32 [#allocation10], 4
          %s416 = int_to_ptr.vmem [resolvable:$true] %s415
          %421 = dma.hbm_to_vmem [thread:$0]  %s7, 2048, %s416, [#allocation9], 128, 128, 8
        $region40: #{tpu_custom_call.1} parent=11 // pred_fallthru
          _
        // Predicated region
        $region41: #{tpu_custom_call.1} parent=11 // pred_check
          %p422 = pneg %p226
        $region42: #{tpu_custom_call.1} parent=11 // pred_check_branch
          %424 = sbr.rel (%p422) target = $region44
        $region43: #{tpu_custom_call.1} parent=11 // pred_region
          _
        $region44: #{tpu_custom_call.1} parent=11 // pred_fallthru
          _
        // Predicated region
        $region45: #{tpu_custom_call.1} parent=11 // pred_check
          %p425 = pneg %p247
        $region46: #{tpu_custom_call.1} parent=11 // pred_check_branch
          %427 = sbr.rel (%p425) target = $region48
        $region47: #{tpu_custom_call.1} parent=11 // pred_region
          %s429 = ssub.s32 4096, 4096
          %430 = vsyncadd [#allocation12], %s429
          %s431 = sshll.u32 [#allocation11], 4
          %s432 = int_to_ptr.vmem [resolvable:$true] %s431
          %437 = dma.hbm_to_vmem [thread:$0]  %s9, 4096, %s432, [#allocation12], 128, 128, 8
        $region48: #{tpu_custom_call.1} parent=11 // pred_fallthru
          _
        // Predicated region
        $region49: #{tpu_custom_call.1} parent=11 // pred_check
          %p438 = pneg %p268
        $region50: #{tpu_custom_call.1} parent=11 // pred_check_branch
          %440 = sbr.rel (%p438) target = $region52
        $region51: #{tpu_custom_call.1} parent=11 // pred_region
          _
        $region52: #{tpu_custom_call.1} parent=11 // pred_fallthru
          _
      $region12: #{tpu_custom_call.1} parent=5 // pred_fallthru
        _
      %p441 = scmp.lt.s32.totalorder %s32, 2
      // Predicated region
      $region53: #{tpu_custom_call.1} parent=5 // pred_check
        %p442 = pneg %p441
      $region54: #{tpu_custom_call.1} parent=5 // pred_check_branch
        %444 = sbr.rel (%p442) target = $region56
      $region55: #{tpu_custom_call.1} parent=5 // pred_region
        // Predicated region
        $region57: #{tpu_custom_call.1} parent=55 // pred_check
          %p445 = pneg %p52
        $region58: #{tpu_custom_call.1} parent=55 // pred_check_branch
          %447 = sbr.rel (%p445) target = $region60
        $region59: #{tpu_custom_call.1} parent=55 // pred_region
          %s448 = sand.u32 %s42, 1
          %s449 = scalar_lea.sflag [#allocation3], %s448
          %s450 = sand.u32 %s42, 1
          %s451 = smul.addr %s450, 256
          %s452 = scalar_lea.vmem [#allocation2], %s451
          %s453 = smul.u32 16, %s32
          %s455 = ssub.s32 4096, 4096
          %456 = vsyncadd %s449, %s455
          %s457 = smul.addr %s453, 2
          %s458 = smul.addr %s457, 128
          %s459 = scalar_lea.hbm %s0, %s458
          %s460 = sshll.u32 %s452, 4
          %s461 = int_to_ptr.vmem [resolvable:$true] %s460
          %466 = dma.hbm_to_vmem [thread:$0]  %s459, 4096, %s461, %s449, 256, 256, 16
        $region60: #{tpu_custom_call.1} parent=55 // pred_fallthru
          _
      $region56: #{tpu_custom_call.1} parent=5 // pred_fallthru
        _
      %p467 = scmp.le.s32.totalorder 1, %s32
      %p468 = scmp.lt.s32.totalorder %s32, 3
      %p469 = pnand %p467, %p468
      %p470 = pneg %p469
      // Predicated region
      $region61: #{tpu_custom_call.1} parent=5 // pred_check
        _
      $region62: #{tpu_custom_call.1} parent=5 // pred_check_branch
        %472 = sbr.rel (%p469) target = $region64
      $region63: #{tpu_custom_call.1} parent=5 // pred_region
        %s473 = ssub.s32 %s32, 1
        %s474 = sand.u32 %s45, 1
        %s475 = scalar_lea.sflag [#allocation3], %s474
        %s476 = sand.u32 %s45, 1
        %s477 = smul.addr %s476, 256
        %s478 = scalar_lea.vmem [#allocation2], %s477
        // Predicated region
        $region65: #{tpu_custom_call.1} parent=63 // pred_check
          %p479 = pneg %p58
        $region66: #{tpu_custom_call.1} parent=63 // pred_check_branch
          %481 = sbr.rel (%p479) target = $region68
        $region67: #{tpu_custom_call.1} parent=63 // pred_region
          %482 = dma.done %s475, 4096
        $region68: #{tpu_custom_call.1} parent=63 // pred_fallthru
          _
        // Predicated region
        $region69: #{tpu_custom_call.1} parent=63 // pred_check
          %p483 = pneg %p79
        $region70: #{tpu_custom_call.1} parent=63 // pred_check_branch
          %485 = sbr.rel (%p483) target = $region72
        $region71: #{tpu_custom_call.1} parent=63 // pred_region
          %486 = dma.done [#allocation6], 4096
        $region72: #{tpu_custom_call.1} parent=63 // pred_fallthru
          _
        // Predicated region
        $region73: #{tpu_custom_call.1} parent=63 // pred_check
          %p487 = pneg %p121
        $region74: #{tpu_custom_call.1} parent=63 // pred_check_branch
          %489 = sbr.rel (%p487) target = $region76
        $region75: #{tpu_custom_call.1} parent=63 // pred_region
          %490 = dma.done [#allocation6], 2048
        $region76: #{tpu_custom_call.1} parent=63 // pred_fallthru
          _
        // Predicated region
        $region77: #{tpu_custom_call.1} parent=63 // pred_check
          %p491 = pneg %p163
        $region78: #{tpu_custom_call.1} parent=63 // pred_check_branch
          %493 = sbr.rel (%p491) target = $region80
        $region79: #{tpu_custom_call.1} parent=63 // pred_region
          %494 = dma.done [#allocation9], 2048
        $region80: #{tpu_custom_call.1} parent=63 // pred_fallthru
          _
        // Predicated region
        $region81: #{tpu_custom_call.1} parent=63 // pred_check
          %p495 = pneg %p205
        $region82: #{tpu_custom_call.1} parent=63 // pred_check_branch
          %497 = sbr.rel (%p495) target = $region84
        $region83: #{tpu_custom_call.1} parent=63 // pred_region
          %498 = dma.done [#allocation9], 2048
        $region84: #{tpu_custom_call.1} parent=63 // pred_fallthru
          _
        // Predicated region
        $region85: #{tpu_custom_call.1} parent=63 // pred_check
          %p499 = pneg %p247
        $region86: #{tpu_custom_call.1} parent=63 // pred_check_branch
          %501 = sbr.rel (%p499) target = $region88
        $region87: #{tpu_custom_call.1} parent=63 // pred_region
          %502 = dma.done [#allocation12], 4096
        $region88: #{tpu_custom_call.1} parent=63 // pred_fallthru
          _
        %s503 = sand.u32 %s45, 1
        %s504 = scalar_lea.sflag [#allocation3], %s503
        %s505 = sand.u32 %s45, 1
        %s506 = smul.addr %s505, 256
        %s507 = scalar_lea.vmem [#allocation2], %s506
        %p508 = pneg %p58
        %p509 = pneg %p55
        %p510 = pneg %p79
        %p511 = pneg %p76
        %p512 = pneg %p100
        %p513 = pneg %p97
        %p514 = pneg %p121
        %p515 = pneg %p118
        %p516 = pneg %p142
        %p517 = pneg %p139
        %p518 = pneg %p163
        %p519 = pneg %p160
        %p520 = pneg %p184
        %p521 = pneg %p181
        %p522 = pneg %p205
        %p523 = pneg %p202
        %p524 = pneg %p226
        %p525 = pneg %p223
        %p526 = pneg %p247
        %p527 = pneg %p244
        %p528 = pneg %p268
        %p529 = pneg %p265
        %p530 = pneg %p294
        %p531 = pneg %p291
        %s532 = sand.u32 %s281, 1
        %s533 = scalar_lea.sflag [#allocation4], %s532
        %s534 = sand.u32 %s281, 1
        %s535 = smul.addr %s534, 256
        %s536 = scalar_lea.vmem [#allocation13], %s535
        %p537 = pneg %p320
        %p538 = pneg %p317
        %s539 = sand.u32 %s37, 1
        %s540 = scalar_lea.sflag [#allocation15], %s539
        %s541 = sand.u32 %s307, 1
        %s542 = smul.addr %s541, 128
        %s543 = scalar_lea.vmem [#allocation14], %s542
        %p544 = pneg %p346
        %p545 = pneg %p343
        %s546 = sand.u32 %s37, 1
        %s547 = scalar_lea.sflag [#allocation15], %s546
        %s548 = sand.u32 %s333, 1
        %s549 = smul.addr %s548, 128
        %s550 = scalar_lea.vmem [#allocation16], %s549
        %s551 = smul.u32 16, %s37
        %s552 = smul.u32 16, %s37
        %s553 = smul.u32 16, %s37
        %s554 = smul.u32 16, %s37
        %v556 = vld [vmem:[%s478] sm:$0xff]
        %v557 = vld [vmem:[%s478 + $0x8] sm:$0xff]
        %v558 = vld [vmem:[%s478 + $0x10] sm:$0xff]
        %v559 = vld [vmem:[%s478 + $0x18] sm:$0xff]
        %v560 = vld [vmem:[%s478 + $0x20] sm:$0xff]
        %v561 = vld [vmem:[%s478 + $0x28] sm:$0xff]
        %v562 = vld [vmem:[%s478 + $0x30] sm:$0xff]
        %v563 = vld [vmem:[%s478 + $0x38] sm:$0xff]
        %v564 = vld [vmem:[%s478 + $0x40] sm:$0xff]
        %v565 = vld [vmem:[%s478 + $0x48] sm:$0xff]
        %v566 = vld [vmem:[%s478 + $0x50] sm:$0xff]
        %v567 = vld [vmem:[%s478 + $0x58] sm:$0xff]
        %v568 = vld [vmem:[%s478 + $0x60] sm:$0xff]
        %v569 = vld [vmem:[%s478 + $0x68] sm:$0xff]
        %v570 = vld [vmem:[%s478 + $0x70] sm:$0xff]
        %v571 = vld [vmem:[%s478 + $0x78] sm:$0xff]
        %v572 = vld [vmem:[%s478 + $0x80] sm:$0xff]
        %v573 = vld [vmem:[%s478 + $0x88] sm:$0xff]
        %v574 = vld [vmem:[%s478 + $0x90] sm:$0xff]
        %v575 = vld [vmem:[%s478 + $0x98] sm:$0xff]
        %v576 = vld [vmem:[%s478 + $0xa0] sm:$0xff]
        %v577 = vld [vmem:[%s478 + $0xa8] sm:$0xff]
        %v578 = vld [vmem:[%s478 + $0xb0] sm:$0xff]
        %v579 = vld [vmem:[%s478 + $0xb8] sm:$0xff]
        %v580 = vld [vmem:[%s478 + $0xc0] sm:$0xff]
        %v581 = vld [vmem:[%s478 + $0xc8] sm:$0xff]
        %v582 = vld [vmem:[%s478 + $0xd0] sm:$0xff]
        %v583 = vld [vmem:[%s478 + $0xd8] sm:$0xff]
        %v584 = vld [vmem:[%s478 + $0xe0] sm:$0xff]
        %v585 = vld [vmem:[%s478 + $0xe8] sm:$0xff]
        %v586 = vld [vmem:[%s478 + $0xf0] sm:$0xff]
        %v587 = vld [vmem:[%s478 + $0xf8] sm:$0xff]
        %v588 = vpack.c.bf16 %v558, %v556
        %v589 = vpack.c.bf16 %v559, %v557
        %v590 = vpack.c.bf16 %v562, %v560
        %v591 = vpack.c.bf16 %v563, %v561
        %v592 = vpack.c.bf16 %v566, %v564
        %v593 = vpack.c.bf16 %v567, %v565
        %v594 = vpack.c.bf16 %v570, %v568
        %v595 = vpack.c.bf16 %v571, %v569
        %v596 = vpack.c.bf16 %v574, %v572
        %v597 = vpack.c.bf16 %v575, %v573
        %v598 = vpack.c.bf16 %v578, %v576
        %v599 = vpack.c.bf16 %v579, %v577
        %v600 = vpack.c.bf16 %v582, %v580
        %v601 = vpack.c.bf16 %v583, %v581
        %v602 = vpack.c.bf16 %v586, %v584
        %v603 = vpack.c.bf16 %v587, %v585
        %v604 = vld [vmem:[#allocation5] sm:$0xff]
        %v605 = vld [vmem:[#allocation5 + $0x8] sm:$0xff]
        %v606 = vld [vmem:[#allocation5 + $0x10] sm:$0xff]
        %v607 = vld [vmem:[#allocation5 + $0x18] sm:$0xff]
        %v608 = vld [vmem:[#allocation5 + $0x20] sm:$0xff]
        %v609 = vld [vmem:[#allocation5 + $0x28] sm:$0xff]
        %v610 = vld [vmem:[#allocation5 + $0x30] sm:$0xff]
        %v611 = vld [vmem:[#allocation5 + $0x38] sm:$0xff]
        %v612 = vld [vmem:[#allocation5 + $0x40] sm:$0xff]
        %v613 = vld [vmem:[#allocation5 + $0x48] sm:$0xff]
        %v614 = vld [vmem:[#allocation5 + $0x50] sm:$0xff]
        %v615 = vld [vmem:[#allocation5 + $0x58] sm:$0xff]
        %v616 = vld [vmem:[#allocation5 + $0x60] sm:$0xff]
        %v617 = vld [vmem:[#allocation5 + $0x68] sm:$0xff]
        %v618 = vld [vmem:[#allocation5 + $0x70] sm:$0xff]
        %v619 = vld [vmem:[#allocation5 + $0x78] sm:$0xff]
        %v620 = vld [vmem:[#allocation5 + $0x80] sm:$0xff]
        %v621 = vld [vmem:[#allocation5 + $0x88] sm:$0xff]
        %v622 = vld [vmem:[#allocation5 + $0x90] sm:$0xff]
        %v623 = vld [vmem:[#allocation5 + $0x98] sm:$0xff]
        %v624 = vld [vmem:[#allocation5 + $0xa0] sm:$0xff]
        %v625 = vld [vmem:[#allocation5 + $0xa8] sm:$0xff]
        %v626 = vld [vmem:[#allocation5 + $0xb0] sm:$0xff]
        %v627 = vld [vmem:[#allocation5 + $0xb8] sm:$0xff]
        %v628 = vld [vmem:[#allocation5 + $0xc0] sm:$0xff]
        %v629 = vld [vmem:[#allocation5 + $0xc8] sm:$0xff]
        %v630 = vld [vmem:[#allocation5 + $0xd0] sm:$0xff]
        %v631 = vld [vmem:[#allocation5 + $0xd8] sm:$0xff]
        %v632 = vld [vmem:[#allocation5 + $0xe0] sm:$0xff]
        %v633 = vld [vmem:[#allocation5 + $0xe8] sm:$0xff]
        %v634 = vld [vmem:[#allocation5 + $0xf0] sm:$0xff]
        %v635 = vld [vmem:[#allocation5 + $0xf8] sm:$0xff]
        %v636 = vld [vmem:[%s2] sm:$0x3]
        %v638 = vlaneseq
        %v639 = vshrl.u32 %v638, 7
        %v640 = vsub.s32 0, %v639
        %v641 = vrot.slane %v636, %v640
        %v642 = vlaneseq
        %v643 = vshrl.u32 %v642, 7
        %v644 = vsub.s32 1, %v643
        %v645 = vrot.slane %v636, %v644
        %v680 = vunpack.c.l.b16 %v604
        %v681 = vunpack.c.h.b16 %v604
        %v682 = vunpack.c.l.b16 %v605
        %v683 = vunpack.c.h.b16 %v605
        %v684 = vunpack.c.l.b16 %v606
        %v685 = vunpack.c.h.b16 %v606
        %v686 = vunpack.c.l.b16 %v607
        %v687 = vunpack.c.h.b16 %v607
        %v688 = vunpack.c.l.b16 %v608
        %v689 = vunpack.c.h.b16 %v608
        %v690 = vunpack.c.l.b16 %v609
        %v691 = vunpack.c.h.b16 %v609
        %v692 = vunpack.c.l.b16 %v610
        %v693 = vunpack.c.h.b16 %v610
        %v694 = vunpack.c.l.b16 %v611
        %v695 = vunpack.c.h.b16 %v611
        %v696 = vunpack.c.l.b16 %v612
        %v697 = vunpack.c.h.b16 %v612
        %v698 = vunpack.c.l.b16 %v613
        %v699 = vunpack.c.h.b16 %v613
        %v700 = vunpack.c.l.b16 %v614
        %v701 = vunpack.c.h.b16 %v614
        %v702 = vunpack.c.l.b16 %v615
        %v703 = vunpack.c.h.b16 %v615
        %v704 = vunpack.c.l.b16 %v616
        %v705 = vunpack.c.h.b16 %v616
        %v706 = vunpack.c.l.b16 %v617
        %v707 = vunpack.c.h.b16 %v617
        %v708 = vunpack.c.l.b16 %v618
        %v709 = vunpack.c.h.b16 %v618
        %v710 = vunpack.c.l.b16 %v619
        %v711 = vunpack.c.h.b16 %v619
        %v712 = vunpack.c.l.b16 %v620
        %v713 = vunpack.c.h.b16 %v620
        %v714 = vunpack.c.l.b16 %v621
        %v715 = vunpack.c.h.b16 %v621
        %v716 = vunpack.c.l.b16 %v622
        %v717 = vunpack.c.h.b16 %v622
        %v718 = vunpack.c.l.b16 %v623
        %v719 = vunpack.c.h.b16 %v623
        %v720 = vunpack.c.l.b16 %v624
        %v721 = vunpack.c.h.b16 %v624
        %v722 = vunpack.c.l.b16 %v625
        %v723 = vunpack.c.h.b16 %v625
        %v724 = vunpack.c.l.b16 %v626
        %v725 = vunpack.c.h.b16 %v626
        %v726 = vunpack.c.l.b16 %v627
        %v727 = vunpack.c.h.b16 %v627
        %v728 = vunpack.c.l.b16 %v628
        %v729 = vunpack.c.h.b16 %v628
        %v730 = vunpack.c.l.b16 %v629
        %v731 = vunpack.c.h.b16 %v629
        %v732 = vunpack.c.l.b16 %v630
        %v733 = vunpack.c.h.b16 %v630
        %v734 = vunpack.c.l.b16 %v631
        %v735 = vunpack.c.h.b16 %v631
        %v736 = vunpack.c.l.b16 %v632
        %v737 = vunpack.c.h.b16 %v632
        %v738 = vunpack.c.l.b16 %v633
        %v739 = vunpack.c.h.b16 %v633
        %v740 = vunpack.c.l.b16 %v634
        %v741 = vunpack.c.h.b16 %v634
        %v742 = vunpack.c.l.b16 %v635
        %v743 = vunpack.c.h.b16 %v635
        %v744 = vpack.c.b16 %v682, %v680
        %v745 = vpack.c.b16 %v683, %v681
        %v746 = vpack.c.b16 %v686, %v684
        %v747 = vpack.c.b16 %v687, %v685
        %v748 = vpack.c.b16 %v690, %v688
        %v749 = vpack.c.b16 %v691, %v689
        %v750 = vpack.c.b16 %v694, %v692
        %v751 = vpack.c.b16 %v695, %v693
        %v752 = vpack.c.b16 %v698, %v696
        %v753 = vpack.c.b16 %v699, %v697
        %v754 = vpack.c.b16 %v702, %v700
        %v755 = vpack.c.b16 %v703, %v701
        %v756 = vpack.c.b16 %v706, %v704
        %v757 = vpack.c.b16 %v707, %v705
        %v758 = vpack.c.b16 %v710, %v708
        %v759 = vpack.c.b16 %v711, %v709
        %v760 = vpack.c.b16 %v714, %v712
        %v761 = vpack.c.b16 %v715, %v713
        %v762 = vpack.c.b16 %v718, %v716
        %v763 = vpack.c.b16 %v719, %v717
        %v764 = vpack.c.b16 %v722, %v720
        %v765 = vpack.c.b16 %v723, %v721
        %v766 = vpack.c.b16 %v726, %v724
        %v767 = vpack.c.b16 %v727, %v725
        %v768 = vpack.c.b16 %v730, %v728
        %v769 = vpack.c.b16 %v731, %v729
        %v770 = vpack.c.b16 %v734, %v732
        %v771 = vpack.c.b16 %v735, %v733
        %v772 = vpack.c.b16 %v738, %v736
        %v773 = vpack.c.b16 %v739, %v737
        %v774 = vpack.c.b16 %v742, %v740
        %v775 = vpack.c.b16 %v743, %v741
        %808 = vmatprep.subr.bf16.mxu0 %v745
        %809 = vmatpush1.bf16.msra.mxu0 %v744
        %810 = vmatprep.subr.bf16.mxu0 %v747
        %811 = vmatpush1.bf16.msra.mxu0 %v746
        %812 = vmatprep.subr.bf16.mxu0 %v749
        %813 = vmatpush1.bf16.msra.mxu0 %v748
        %814 = vmatprep.subr.bf16.mxu0 %v751
        %815 = vmatpush1.bf16.msra.mxu0 %v750
        %816 = vmatprep.subr.bf16.mxu0 %v753
        %817 = vmatpush1.bf16.msra.mxu0 %v752
        %818 = vmatprep.subr.bf16.mxu0 %v755
        %819 = vmatpush1.bf16.msra.mxu0 %v754
        %820 = vmatprep.subr.bf16.mxu0 %v757
        %821 = vmatpush1.bf16.msra.mxu0 %v756
        %822 = vmatprep.subr.bf16.mxu0 %v759
        %823 = vmatpush1.bf16.msra.mxu0 %v758
        %824 = vmatprep.subr.bf16.mxu0 %v761
        %825 = vmatpush1.bf16.msra.mxu0 %v760
        %826 = vmatprep.subr.bf16.mxu0 %v763
        %827 = vmatpush1.bf16.msra.mxu0 %v762
        %828 = vmatprep.subr.bf16.mxu0 %v765
        %829 = vmatpush1.bf16.msra.mxu0 %v764
        %830 = vmatprep.subr.bf16.mxu0 %v767
        %831 = vmatpush1.bf16.msra.mxu0 %v766
        %832 = vmatprep.subr.bf16.mxu0 %v769
        %833 = vmatpush1.bf16.msra.mxu0 %v768
        %834 = vmatprep.subr.bf16.mxu0 %v771
        %835 = vmatpush1.bf16.msra.mxu0 %v770
        %836 = vmatprep.subr.bf16.mxu0 %v773
        %837 = vmatpush1.bf16.msra.mxu0 %v772
        %838 = vmatprep.subr.bf16.mxu0 %v775
        %839 = vmatpush1.bf16.msra.mxu0 %v774
        %840 = vmatprep.mubr.bf16.mxu0 %v589
        %841 = vmatmul.mubr.bf16.gmra.mrb[0].mxu0 %v588
        %v842 = vpop.f32.mrb[0].mxu0
        %v843 = vadd.f32 %v641, %v842
        %v844 = vpop.f32.mrb[0].mxu0
        %v845 = vadd.f32 %v645, %v844
        %v846 = vpop.f32.mrb[0].mxu0
        %v847 = vadd.f32 %v641, %v846
        %v848 = vpop.f32.mrb[0].mxu0
        %v849 = vadd.f32 %v645, %v848
        %850 = vmatprep.mubr.bf16.mxu0 %v591
        %851 = vmatmul.mubr.bf16.gmra.mrb[0].mxu0 %v590
        %v852 = vpop.f32.mrb[0].mxu0
        %v853 = vadd.f32 %v641, %v852
        %v854 = vpop.f32.mrb[0].mxu0
        %v855 = vadd.f32 %v645, %v854
        %v856 = vpop.f32.mrb[0].mxu0
        %v857 = vadd.f32 %v641, %v856
        %v858 = vpop.f32.mrb[0].mxu0
        %v859 = vadd.f32 %v645, %v858
        %860 = vmatprep.mubr.bf16.mxu0 %v593
        %861 = vmatmul.mubr.bf16.gmra.mrb[0].mxu0 %v592
        %v862 = vpop.f32.mrb[0].mxu0
        %v863 = vadd.f32 %v641, %v862
        %v864 = vpop.f32.mrb[0].mxu0
        %v865 = vadd.f32 %v645, %v864
        %v866 = vpop.f32.mrb[0].mxu0
        %v867 = vadd.f32 %v641, %v866
        %v868 = vpop.f32.mrb[0].mxu0
        %v869 = vadd.f32 %v645, %v868
        %870 = vmatprep.mubr.bf16.mxu0 %v595
        %871 = vmatmul.mubr.bf16.gmra.mrb[0].mxu0 %v594
        %v872 = vpop.f32.mrb[0].mxu0
        %v873 = vadd.f32 %v641, %v872
        %v874 = vpop.f32.mrb[0].mxu0
        %v875 = vadd.f32 %v645, %v874
        %v876 = vpop.f32.mrb[0].mxu0
        %v877 = vadd.f32 %v641, %v876
        %v878 = vpop.f32.mrb[0].mxu0
        %v879 = vadd.f32 %v645, %v878
        %880 = vmatprep.mubr.bf16.mxu0 %v597
        %881 = vmatmul.mubr.bf16.gmra.mrb[0].mxu0 %v596
        %v882 = vpop.f32.mrb[0].mxu0
        %v883 = vadd.f32 %v641, %v882
        %v884 = vpop.f32.mrb[0].mxu0
        %v885 = vadd.f32 %v645, %v884
        %v886 = vpop.f32.mrb[0].mxu0
        %v887 = vadd.f32 %v641, %v886
        %v888 = vpop.f32.mrb[0].mxu0
        %v889 = vadd.f32 %v645, %v888
        %890 = vmatprep.mubr.bf16.mxu0 %v599
        %891 = vmatmul.mubr.bf16.gmra.mrb[0].mxu0 %v598
        %v892 = vpop.f32.mrb[0].mxu0
        %v893 = vadd.f32 %v641, %v892
        %v894 = vpop.f32.mrb[0].mxu0
        %v895 = vadd.f32 %v645, %v894
        %v896 = vpop.f32.mrb[0].mxu0
        %v897 = vadd.f32 %v641, %v896
        %v898 = vpop.f32.mrb[0].mxu0
        %v899 = vadd.f32 %v645, %v898
        %900 = vmatprep.mubr.bf16.mxu0 %v601
        %901 = vmatmul.mubr.bf16.gmra.mrb[0].mxu0 %v600
        %v902 = vpop.f32.mrb[0].mxu0
        %v903 = vadd.f32 %v641, %v902
        %v904 = vpop.f32.mrb[0].mxu0
        %v905 = vadd.f32 %v645, %v904
        %v906 = vpop.f32.mrb[0].mxu0
        %v907 = vadd.f32 %v641, %v906
        %v908 = vpop.f32.mrb[0].mxu0
        %v909 = vadd.f32 %v645, %v908
        %910 = vmatprep.mubr.bf16.mxu0 %v603
        %911 = vmatmul.mubr.bf16.gmra.mrb[0].mxu0 %v602
        %v912 = vpop.f32.mrb[0].mxu0
        %v913 = vadd.f32 %v641, %v912
        %v914 = vpop.f32.mrb[0].mxu0
        %v915 = vadd.f32 %v645, %v914
        %v916 = vpop.f32.mrb[0].mxu0
        %v917 = vadd.f32 %v641, %v916
        %v918 = vpop.f32.mrb[0].mxu0
        %v919 = vadd.f32 %v645, %v918
        %920 = vdwg.mxu0
        %v921 = vmax.f32 %v843, 0.0
        %v922 = vmax.f32 %v845, 0.0
        %v923 = vmax.f32 %v847, 0.0
        %v924 = vmax.f32 %v849, 0.0
        %v925 = vmax.f32 %v853, 0.0
        %v926 = vmax.f32 %v855, 0.0
        %v927 = vmax.f32 %v857, 0.0
        %v928 = vmax.f32 %v859, 0.0
        %v929 = vmax.f32 %v863, 0.0
        %v930 = vmax.f32 %v865, 0.0
        %v931 = vmax.f32 %v867, 0.0
        %v932 = vmax.f32 %v869, 0.0
        %v933 = vmax.f32 %v873, 0.0
        %v934 = vmax.f32 %v875, 0.0
        %v935 = vmax.f32 %v877, 0.0
        %v936 = vmax.f32 %v879, 0.0
        %v937 = vmax.f32 %v883, 0.0
        %v938 = vmax.f32 %v885, 0.0
        %v939 = vmax.f32 %v887, 0.0
        %v940 = vmax.f32 %v889, 0.0
        %v941 = vmax.f32 %v893, 0.0
        %v942 = vmax.f32 %v895, 0.0
        %v943 = vmax.f32 %v897, 0.0
        %v944 = vmax.f32 %v899, 0.0
        %v945 = vmax.f32 %v903, 0.0
        %v946 = vmax.f32 %v905, 0.0
        %v947 = vmax.f32 %v907, 0.0
        %v948 = vmax.f32 %v909, 0.0
        %v949 = vmax.f32 %v913, 0.0
        %v950 = vmax.f32 %v915, 0.0
        %v951 = vmax.f32 %v917, 0.0
        %v952 = vmax.f32 %v919, 0.0
        %v953 = vpack.c.bf16 %v923, %v921
        %v954 = vpack.c.bf16 %v924, %v922
        %v955 = vpack.c.bf16 %v927, %v925
        %v956 = vpack.c.bf16 %v928, %v926
        %v957 = vpack.c.bf16 %v931, %v929
        %v958 = vpack.c.bf16 %v932, %v930
        %v959 = vpack.c.bf16 %v935, %v933
        %v960 = vpack.c.bf16 %v936, %v934
        %v961 = vpack.c.bf16 %v939, %v937
        %v962 = vpack.c.bf16 %v940, %v938
        %v963 = vpack.c.bf16 %v943, %v941
        %v964 = vpack.c.bf16 %v944, %v942
        %v965 = vpack.c.bf16 %v947, %v945
        %v966 = vpack.c.bf16 %v948, %v946
        %v967 = vpack.c.bf16 %v951, %v949
        %v968 = vpack.c.bf16 %v952, %v950
        %v969 = vld [vmem:[#allocation7] sm:$0xf]
        %v970 = vld [vmem:[#allocation7 + $0x4] sm:$0xf]
        %v971 = vld [vmem:[#allocation7 + $0x8] sm:$0xf]
        %v972 = vld [vmem:[#allocation7 + $0xc] sm:$0xf]
        %v973 = vld [vmem:[#allocation7 + $0x10] sm:$0xf]
        %v974 = vld [vmem:[#allocation7 + $0x14] sm:$0xf]
        %v975 = vld [vmem:[#allocation7 + $0x18] sm:$0xf]
        %v976 = vld [vmem:[#allocation7 + $0x1c] sm:$0xf]
        %v977 = vld [vmem:[#allocation7 + $0x20] sm:$0xf]
        %v978 = vld [vmem:[#allocation7 + $0x24] sm:$0xf]
        %v979 = vld [vmem:[#allocation7 + $0x28] sm:$0xf]
        %v980 = vld [vmem:[#allocation7 + $0x2c] sm:$0xf]
        %v981 = vld [vmem:[#allocation7 + $0x30] sm:$0xf]
        %v982 = vld [vmem:[#allocation7 + $0x34] sm:$0xf]
        %v983 = vld [vmem:[#allocation7 + $0x38] sm:$0xf]
        %v984 = vld [vmem:[#allocation7 + $0x3c] sm:$0xf]
        %v985 = vld [vmem:[#allocation7 + $0x40] sm:$0xf]
        %v986 = vld [vmem:[#allocation7 + $0x44] sm:$0xf]
        %v987 = vld [vmem:[#allocation7 + $0x48] sm:$0xf]
        %v988 = vld [vmem:[#allocation7 + $0x4c] sm:$0xf]
        %v989 = vld [vmem:[#allocation7 + $0x50] sm:$0xf]
        %v990 = vld [vmem:[#allocation7 + $0x54] sm:$0xf]
        %v991 = vld [vmem:[#allocation7 + $0x58] sm:$0xf]
        %v992 = vld [vmem:[#allocation7 + $0x5c] sm:$0xf]
        %v993 = vld [vmem:[#allocation7 + $0x60] sm:$0xf]
        %v994 = vld [vmem:[#allocation7 + $0x64] sm:$0xf]
        %v995 = vld [vmem:[#allocation7 + $0x68] sm:$0xf]
        %v996 = vld [vmem:[#allocation7 + $0x6c] sm:$0xf]
        %v997 = vld [vmem:[#allocation7 + $0x70] sm:$0xf]
        %v998 = vld [vmem:[#allocation7 + $0x74] sm:$0xf]
        %v999 = vld [vmem:[#allocation7 + $0x78] sm:$0xf]
        %v1000 = vld [vmem:[#allocation7 + $0x7c] sm:$0xf]
        %v1001 = vld [vmem:[%s4] sm:$0x1]
        %v1003 = vlaneseq
        %v1004 = vshrl.u32 %v1003, 7
        %v1005 = vsub.s32 0, %v1004
        %v1006 = vrot.slane %v1001, %v1005
        %v1040 = vunpack.c.l.b16 %v969
        %v1041 = vunpack.c.l.b16 %v970
        %v1042 = vunpack.c.l.b16 %v971
        %v1043 = vunpack.c.l.b16 %v972
        %v1044 = vunpack.c.l.b16 %v973
        %v1045 = vunpack.c.l.b16 %v974
        %v1046 = vunpack.c.l.b16 %v975
        %v1047 = vunpack.c.l.b16 %v976
        %v1048 = vunpack.c.l.b16 %v977
        %v1049 = vunpack.c.l.b16 %v978
        %v1050 = vunpack.c.l.b16 %v979
        %v1051 = vunpack.c.l.b16 %v980
        %v1052 = vunpack.c.l.b16 %v981
        %v1053 = vunpack.c.l.b16 %v982
        %v1054 = vunpack.c.l.b16 %v983
        %v1055 = vunpack.c.l.b16 %v984
        %v1056 = vunpack.c.l.b16 %v985
        %v1057 = vunpack.c.l.b16 %v986
        %v1058 = vunpack.c.l.b16 %v987
        %v1059 = vunpack.c.l.b16 %v988
        %v1060 = vunpack.c.l.b16 %v989
        %v1061 = vunpack.c.l.b16 %v990
        %v1062 = vunpack.c.l.b16 %v991
        %v1063 = vunpack.c.l.b16 %v992
        %v1064 = vunpack.c.l.b16 %v993
        %v1065 = vunpack.c.l.b16 %v994
        %v1066 = vunpack.c.l.b16 %v995
        %v1067 = vunpack.c.l.b16 %v996
        %v1068 = vunpack.c.l.b16 %v997
        %v1069 = vunpack.c.l.b16 %v998
        %v1070 = vunpack.c.l.b16 %v999
        %v1071 = vunpack.c.l.b16 %v1000
        %v1072 = vpack.c.b16 %v1041, %v1040
        %v1073 = vpack.c.b16 %v1043, %v1042
        %v1074 = vpack.c.b16 %v1045, %v1044
        %v1075 = vpack.c.b16 %v1047, %v1046
        %v1076 = vpack.c.b16 %v1049, %v1048
        %v1077 = vpack.c.b16 %v1051, %v1050
        %v1078 = vpack.c.b16 %v1053, %v1052
        %v1079 = vpack.c.b16 %v1055, %v1054
        %v1080 = vpack.c.b16 %v1057, %v1056
        %v1081 = vpack.c.b16 %v1059, %v1058
        %v1082 = vpack.c.b16 %v1061, %v1060
        %v1083 = vpack.c.b16 %v1063, %v1062
        %v1084 = vpack.c.b16 %v1065, %v1064
        %v1085 = vpack.c.b16 %v1067, %v1066
        %v1086 = vpack.c.b16 %v1069, %v1068
        %v1087 = vpack.c.b16 %v1071, %v1070
        %1104 = vmatprep.subr.bf16.mxu0 0
        %1105 = vmatpush1.bf16.msra.mxu0 %v1072
        %1106 = vmatprep.subr.bf16.mxu0 0
        %1107 = vmatpush1.bf16.msra.mxu0 %v1073
        %1108 = vmatprep.subr.bf16.mxu0 0
        %1109 = vmatpush1.bf16.msra.mxu0 %v1074
        %1110 = vmatprep.subr.bf16.mxu0 0
        %1111 = vmatpush1.bf16.msra.mxu0 %v1075
        %1112 = vmatprep.subr.bf16.mxu0 0
        %1113 = vmatpush1.bf16.msra.mxu0 %v1076
        %1114 = vmatprep.subr.bf16.mxu0 0
        %1115 = vmatpush1.bf16.msra.mxu0 %v1077
        %1116 = vmatprep.subr.bf16.mxu0 0
        %1117 = vmatpush1.bf16.msra.mxu0 %v1078
        %1118 = vmatprep.subr.bf16.mxu0 0
        %1119 = vmatpush1.bf16.msra.mxu0 %v1079
        %1120 = vmatprep.subr.bf16.mxu0 0
        %1121 = vmatpush1.bf16.msra.mxu0 %v1080
        %1122 = vmatprep.subr.bf16.mxu0 0
        %1123 = vmatpush1.bf16.msra.mxu0 %v1081
        %1124 = vmatprep.subr.bf16.mxu0 0
        %1125 = vmatpush1.bf16.msra.mxu0 %v1082
        %1126 = vmatprep.subr.bf16.mxu0 0
        %1127 = vmatpush1.bf16.msra.mxu0 %v1083
        %1128 = vmatprep.subr.bf16.mxu0 0
        %1129 = vmatpush1.bf16.msra.mxu0 %v1084
        %1130 = vmatprep.subr.bf16.mxu0 0
        %1131 = vmatpush1.bf16.msra.mxu0 %v1085
        %1132 = vmatprep.subr.bf16.mxu0 0
        %1133 = vmatpush1.bf16.msra.mxu0 %v1086
        %1134 = vmatprep.subr.bf16.mxu0 0
        %1135 = vmatpush1.bf16.msra.mxu0 %v1087
        %1136 = vmatprep.mubr.bf16.mxu0 %v954
        %1137 = vmatmul.mubr.bf16.gmra.mrb[0].mxu0 %v953
        %v1138 = vpop.f32.mrb[0].mxu0
        %v1139 = vadd.f32 %v1006, %v1138
        %v1140 = vpop.f32.mrb[0].mxu0
        %v1141 = vpop.f32.mrb[0].mxu0
        %v1142 = vadd.f32 %v1006, %v1141
        %v1143 = vpop.f32.mrb[0].mxu0
        %1144 = vmatprep.mubr.bf16.mxu0 %v956
        %1145 = vmatmul.mubr.bf16.gmra.mrb[0].mxu0 %v955
        %v1146 = vpop.f32.mrb[0].mxu0
        %v1147 = vadd.f32 %v1006, %v1146
        %v1148 = vpop.f32.mrb[0].mxu0
        %v1149 = vpop.f32.mrb[0].mxu0
        %v1150 = vadd.f32 %v1006, %v1149
        %v1151 = vpop.f32.mrb[0].mxu0
        %1152 = vmatprep.mubr.bf16.mxu0 %v958
        %1153 = vmatmul.mubr.bf16.gmra.mrb[0].mxu0 %v957
        %v1154 = vpop.f32.mrb[0].mxu0
        %v1155 = vadd.f32 %v1006, %v1154
        %v1156 = vpop.f32.mrb[0].mxu0
        %v1157 = vpop.f32.mrb[0].mxu0
        %v1158 = vadd.f32 %v1006, %v1157
        %v1159 = vpop.f32.mrb[0].mxu0
        %1160 = vmatprep.mubr.bf16.mxu0 %v960
        %1161 = vmatmul.mubr.bf16.gmra.mrb[0].mxu0 %v959
        %v1162 = vpop.f32.mrb[0].mxu0
        %v1163 = vadd.f32 %v1006, %v1162
        %v1164 = vpop.f32.mrb[0].mxu0
        %v1165 = vpop.f32.mrb[0].mxu0
        %v1166 = vadd.f32 %v1006, %v1165
        %v1167 = vpop.f32.mrb[0].mxu0
        %1168 = vmatprep.mubr.bf16.mxu0 %v962
        %1169 = vmatmul.mubr.bf16.gmra.mrb[0].mxu0 %v961
        %v1170 = vpop.f32.mrb[0].mxu0
        %v1171 = vadd.f32 %v1006, %v1170
        %v1172 = vpop.f32.mrb[0].mxu0
        %v1173 = vpop.f32.mrb[0].mxu0
        %v1174 = vadd.f32 %v1006, %v1173
        %v1175 = vpop.f32.mrb[0].mxu0
        %1176 = vmatprep.mubr.bf16.mxu0 %v964
        %1177 = vmatmul.mubr.bf16.gmra.mrb[0].mxu0 %v963
        %v1178 = vpop.f32.mrb[0].mxu0
        %v1179 = vadd.f32 %v1006, %v1178
        %v1180 = vpop.f32.mrb[0].mxu0
        %v1181 = vpop.f32.mrb[0].mxu0
        %v1182 = vadd.f32 %v1006, %v1181
        %v1183 = vpop.f32.mrb[0].mxu0
        %1184 = vmatprep.mubr.bf16.mxu0 %v966
        %1185 = vmatmul.mubr.bf16.gmra.mrb[0].mxu0 %v965
        %v1186 = vpop.f32.mrb[0].mxu0
        %v1187 = vadd.f32 %v1006, %v1186
        %v1188 = vpop.f32.mrb[0].mxu0
        %v1189 = vpop.f32.mrb[0].mxu0
        %v1190 = vadd.f32 %v1006, %v1189
        %v1191 = vpop.f32.mrb[0].mxu0
        %1192 = vmatprep.mubr.bf16.mxu0 %v968
        %1193 = vmatmul.mubr.bf16.gmra.mrb[0].mxu0 %v967
        %v1194 = vpop.f32.mrb[0].mxu0
        %v1195 = vadd.f32 %v1006, %v1194
        %v1196 = vpop.f32.mrb[0].mxu0
        %v1197 = vpop.f32.mrb[0].mxu0
        %v1198 = vadd.f32 %v1006, %v1197
        %v1199 = vpop.f32.mrb[0].mxu0
        %1200 = vdwg.mxu0
        %v1201 = vld [vmem:[#allocation8] sm:$0xf]
        %v1202 = vld [vmem:[#allocation8 + $0x4] sm:$0xf]
        %v1203 = vld [vmem:[#allocation8 + $0x8] sm:$0xf]
        %v1204 = vld [vmem:[#allocation8 + $0xc] sm:$0xf]
        %v1205 = vld [vmem:[#allocation8 + $0x10] sm:$0xf]
        %v1206 = vld [vmem:[#allocation8 + $0x14] sm:$0xf]
        %v1207 = vld [vmem:[#allocation8 + $0x18] sm:$0xf]
        %v1208 = vld [vmem:[#allocation8 + $0x1c] sm:$0xf]
        %v1209 = vld [vmem:[#allocation8 + $0x20] sm:$0xf]
        %v1210 = vld [vmem:[#allocation8 + $0x24] sm:$0xf]
        %v1211 = vld [vmem:[#allocation8 + $0x28] sm:$0xf]
        %v1212 = vld [vmem:[#allocation8 + $0x2c] sm:$0xf]
        %v1213 = vld [vmem:[#allocation8 + $0x30] sm:$0xf]
        %v1214 = vld [vmem:[#allocation8 + $0x34] sm:$0xf]
        %v1215 = vld [vmem:[#allocation8 + $0x38] sm:$0xf]
        %v1216 = vld [vmem:[#allocation8 + $0x3c] sm:$0xf]
        %v1217 = vld [vmem:[#allocation8 + $0x40] sm:$0xf]
        %v1218 = vld [vmem:[#allocation8 + $0x44] sm:$0xf]
        %v1219 = vld [vmem:[#allocation8 + $0x48] sm:$0xf]
        %v1220 = vld [vmem:[#allocation8 + $0x4c] sm:$0xf]
        %v1221 = vld [vmem:[#allocation8 + $0x50] sm:$0xf]
        %v1222 = vld [vmem:[#allocation8 + $0x54] sm:$0xf]
        %v1223 = vld [vmem:[#allocation8 + $0x58] sm:$0xf]
        %v1224 = vld [vmem:[#allocation8 + $0x5c] sm:$0xf]
        %v1225 = vld [vmem:[#allocation8 + $0x60] sm:$0xf]
        %v1226 = vld [vmem:[#allocation8 + $0x64] sm:$0xf]
        %v1227 = vld [vmem:[#allocation8 + $0x68] sm:$0xf]
        %v1228 = vld [vmem:[#allocation8 + $0x6c] sm:$0xf]
        %v1229 = vld [vmem:[#allocation8 + $0x70] sm:$0xf]
        %v1230 = vld [vmem:[#allocation8 + $0x74] sm:$0xf]
        %v1231 = vld [vmem:[#allocation8 + $0x78] sm:$0xf]
        %v1232 = vld [vmem:[#allocation8 + $0x7c] sm:$0xf]
        %v1233 = vld [vmem:[%s6] sm:$0x1]
        %v1235 = vlaneseq
        %v1236 = vshrl.u32 %v1235, 7
        %v1237 = vsub.s32 0, %v1236
        %v1238 = vrot.slane %v1233, %v1237
        %v1272 = vunpack.c.l.b16 %v1201
        %v1273 = vunpack.c.l.b16 %v1202
        %v1274 = vunpack.c.l.b16 %v1203
        %v1275 = vunpack.c.l.b16 %v1204
        %v1276 = vunpack.c.l.b16 %v1205
        %v1277 = vunpack.c.l.b16 %v1206
        %v1278 = vunpack.c.l.b16 %v1207
        %v1279 = vunpack.c.l.b16 %v1208
        %v1280 = vunpack.c.l.b16 %v1209
        %v1281 = vunpack.c.l.b16 %v1210
        %v1282 = vunpack.c.l.b16 %v1211
        %v1283 = vunpack.c.l.b16 %v1212
        %v1284 = vunpack.c.l.b16 %v1213
        %v1285 = vunpack.c.l.b16 %v1214
        %v1286 = vunpack.c.l.b16 %v1215
        %v1287 = vunpack.c.l.b16 %v1216
        %v1288 = vunpack.c.l.b16 %v1217
        %v1289 = vunpack.c.l.b16 %v1218
        %v1290 = vunpack.c.l.b16 %v1219
        %v1291 = vunpack.c.l.b16 %v1220
        %v1292 = vunpack.c.l.b16 %v1221
        %v1293 = vunpack.c.l.b16 %v1222
        %v1294 = vunpack.c.l.b16 %v1223
        %v1295 = vunpack.c.l.b16 %v1224
        %v1296 = vunpack.c.l.b16 %v1225
        %v1297 = vunpack.c.l.b16 %v1226
        %v1298 = vunpack.c.l.b16 %v1227
        %v1299 = vunpack.c.l.b16 %v1228
        %v1300 = vunpack.c.l.b16 %v1229
        %v1301 = vunpack.c.l.b16 %v1230
        %v1302 = vunpack.c.l.b16 %v1231
        %v1303 = vunpack.c.l.b16 %v1232
        %v1304 = vpack.c.b16 %v1273, %v1272
        %v1305 = vpack.c.b16 %v1275, %v1274
        %v1306 = vpack.c.b16 %v1277, %v1276
        %v1307 = vpack.c.b16 %v1279, %v1278
        %v1308 = vpack.c.b16 %v1281, %v1280
        %v1309 = vpack.c.b16 %v1283, %v1282
        %v1310 = vpack.c.b16 %v1285, %v1284
        %v1311 = vpack.c.b16 %v1287, %v1286
        %v1312 = vpack.c.b16 %v1289, %v1288
        %v1313 = vpack.c.b16 %v1291, %v1290
        %v1314 = vpack.c.b16 %v1293, %v1292
        %v1315 = vpack.c.b16 %v1295, %v1294
        %v1316 = vpack.c.b16 %v1297, %v1296
        %v1317 = vpack.c.b16 %v1299, %v1298
        %v1318 = vpack.c.b16 %v1301, %v1300
        %v1319 = vpack.c.b16 %v1303, %v1302
        %1336 = vmatprep.subr.bf16.mxu0 0
        %1337 = vmatpush1.bf16.msra.mxu0 %v1304
        %1338 = vmatprep.subr.bf16.mxu0 0
        %1339 = vmatpush1.bf16.msra.mxu0 %v1305
        %1340 = vmatprep.subr.bf16.mxu0 0
        %1341 = vmatpush1.bf16.msra.mxu0 %v1306
        %1342 = vmatprep.subr.bf16.mxu0 0
        %1343 = vmatpush1.bf16.msra.mxu0 %v1307
        %1344 = vmatprep.subr.bf16.mxu0 0
        %1345 = vmatpush1.bf16.msra.mxu0 %v1308
        %1346 = vmatprep.subr.bf16.mxu0 0
        %1347 = vmatpush1.bf16.msra.mxu0 %v1309
        %1348 = vmatprep.subr.bf16.mxu0 0
        %1349 = vmatpush1.bf16.msra.mxu0 %v1310
        %1350 = vmatprep.subr.bf16.mxu0 0
        %1351 = vmatpush1.bf16.msra.mxu0 %v1311
        %1352 = vmatprep.subr.bf16.mxu0 0
        %1353 = vmatpush1.bf16.msra.mxu0 %v1312
        %1354 = vmatprep.subr.bf16.mxu0 0
        %1355 = vmatpush1.bf16.msra.mxu0 %v1313
        %1356 = vmatprep.subr.bf16.mxu0 0
        %1357 = vmatpush1.bf16.msra.mxu0 %v1314
        %1358 = vmatprep.subr.bf16.mxu0 0
        %1359 = vmatpush1.bf16.msra.mxu0 %v1315
        %1360 = vmatprep.subr.bf16.mxu0 0
        %1361 = vmatpush1.bf16.msra.mxu0 %v1316
        %1362 = vmatprep.subr.bf16.mxu0 0
        %1363 = vmatpush1.bf16.msra.mxu0 %v1317
        %1364 = vmatprep.subr.bf16.mxu0 0
        %1365 = vmatpush1.bf16.msra.mxu0 %v1318
        %1366 = vmatprep.subr.bf16.mxu0 0
        %1367 = vmatpush1.bf16.msra.mxu0 %v1319
        %1368 = vmatprep.mubr.bf16.mxu0 %v954
        %1369 = vmatmul.mubr.bf16.gmra.mrb[0].mxu0 %v953
        %v1370 = vpop.f32.mrb[0].mxu0
        %v1371 = vadd.f32 %v1238, %v1370
        %v1372 = vpop.f32.mrb[0].mxu0
        %v1373 = vpop.f32.mrb[0].mxu0
        %v1374 = vadd.f32 %v1238, %v1373
        %v1375 = vpop.f32.mrb[0].mxu0
        %1376 = vmatprep.mubr.bf16.mxu0 %v956
        %1377 = vmatmul.mubr.bf16.gmra.mrb[0].mxu0 %v955
        %v1378 = vpop.f32.mrb[0].mxu0
        %v1379 = vadd.f32 %v1238, %v1378
        %v1380 = vpop.f32.mrb[0].mxu0
        %v1381 = vpop.f32.mrb[0].mxu0
        %v1382 = vadd.f32 %v1238, %v1381
        %v1383 = vpop.f32.mrb[0].mxu0
        %1384 = vmatprep.mubr.bf16.mxu0 %v958
        %1385 = vmatmul.mubr.bf16.gmra.mrb[0].mxu0 %v957
        %v1386 = vpop.f32.mrb[0].mxu0
        %v1387 = vadd.f32 %v1238, %v1386
        %v1388 = vpop.f32.mrb[0].mxu0
        %v1389 = vpop.f32.mrb[0].mxu0
        %v1390 = vadd.f32 %v1238, %v1389
        %v1391 = vpop.f32.mrb[0].mxu0
        %1392 = vmatprep.mubr.bf16.mxu0 %v960
        %1393 = vmatmul.mubr.bf16.gmra.mrb[0].mxu0 %v959
        %v1394 = vpop.f32.mrb[0].mxu0
        %v1395 = vadd.f32 %v1238, %v1394
        %v1396 = vpop.f32.mrb[0].mxu0
        %v1397 = vpop.f32.mrb[0].mxu0
        %v1398 = vadd.f32 %v1238, %v1397
        %v1399 = vpop.f32.mrb[0].mxu0
        %1400 = vmatprep.mubr.bf16.mxu0 %v962
        %1401 = vmatmul.mubr.bf16.gmra.mrb[0].mxu0 %v961
        %v1402 = vpop.f32.mrb[0].mxu0
        %v1403 = vadd.f32 %v1238, %v1402
        %v1404 = vpop.f32.mrb[0].mxu0
        %v1405 = vpop.f32.mrb[0].mxu0
        %v1406 = vadd.f32 %v1238, %v1405
        %v1407 = vpop.f32.mrb[0].mxu0
        %1408 = vmatprep.mubr.bf16.mxu0 %v964
        %1409 = vmatmul.mubr.bf16.gmra.mrb[0].mxu0 %v963
        %v1410 = vpop.f32.mrb[0].mxu0
        %v1411 = vadd.f32 %v1238, %v1410
        %v1412 = vpop.f32.mrb[0].mxu0
        %v1413 = vpop.f32.mrb[0].mxu0
        %v1414 = vadd.f32 %v1238, %v1413
        %v1415 = vpop.f32.mrb[0].mxu0
        %1416 = vmatprep.mubr.bf16.mxu0 %v966
        %1417 = vmatmul.mubr.bf16.gmra.mrb[0].mxu0 %v965
        %v1418 = vpop.f32.mrb[0].mxu0
        %v1419 = vadd.f32 %v1238, %v1418
        %v1420 = vpop.f32.mrb[0].mxu0
        %v1421 = vpop.f32.mrb[0].mxu0
        %v1422 = vadd.f32 %v1238, %v1421
        %v1423 = vpop.f32.mrb[0].mxu0
        %1424 = vmatprep.mubr.bf16.mxu0 %v968
        %1425 = vmatmul.mubr.bf16.gmra.mrb[0].mxu0 %v967
        %v1426 = vpop.f32.mrb[0].mxu0
        %v1427 = vadd.f32 %v1238, %v1426
        %v1428 = vpop.f32.mrb[0].mxu0
        %v1429 = vpop.f32.mrb[0].mxu0
        %v1430 = vadd.f32 %v1238, %v1429
        %v1431 = vpop.f32.mrb[0].mxu0
        %1432 = vdwg.mxu0
        %v1433 = vpack.c.bf16 %v1142, %v1139
        %v1434 = vpack.c.bf16 %v1150, %v1147
        %v1435 = vpack.c.bf16 %v1158, %v1155
        %v1436 = vpack.c.bf16 %v1166, %v1163
        %v1437 = vpack.c.bf16 %v1174, %v1171
        %v1438 = vpack.c.bf16 %v1182, %v1179
        %v1439 = vpack.c.bf16 %v1190, %v1187
        %v1440 = vpack.c.bf16 %v1198, %v1195
        %v1441 = vld [vmem:[#allocation10] sm:$0xff]
        %v1442 = vld [vmem:[#allocation10 + $0x8] sm:$0xff]
        %v1443 = vld [vmem:[#allocation10 + $0x10] sm:$0xff]
        %v1444 = vld [vmem:[#allocation10 + $0x18] sm:$0xff]
        %v1445 = vld [vmem:[#allocation10 + $0x20] sm:$0xff]
        %v1446 = vld [vmem:[#allocation10 + $0x28] sm:$0xff]
        %v1447 = vld [vmem:[#allocation10 + $0x30] sm:$0xff]
        %v1448 = vld [vmem:[#allocation10 + $0x38] sm:$0xff]
        %v1449 = vld [vmem:[#allocation10 + $0x40] sm:$0xff]
        %v1450 = vld [vmem:[#allocation10 + $0x48] sm:$0xff]
        %v1451 = vld [vmem:[#allocation10 + $0x50] sm:$0xff]
        %v1452 = vld [vmem:[#allocation10 + $0x58] sm:$0xff]
        %v1453 = vld [vmem:[#allocation10 + $0x60] sm:$0xff]
        %v1454 = vld [vmem:[#allocation10 + $0x68] sm:$0xff]
        %v1455 = vld [vmem:[#allocation10 + $0x70] sm:$0xff]
        %v1456 = vld [vmem:[#allocation10 + $0x78] sm:$0xff]
        %v1457 = vld [vmem:[%s8] sm:$0x3]
        %v1459 = vlaneseq
        %v1460 = vshrl.u32 %v1459, 7
        %v1461 = vsub.s32 0, %v1460
        %v1462 = vrot.slane %v1457, %v1461
        %v1463 = vlaneseq
        %v1464 = vshrl.u32 %v1463, 7
        %v1465 = vsub.s32 1, %v1464
        %v1466 = vrot.slane %v1457, %v1465
        %v1485 = vunpack.c.l.b16 %v1441
        %v1486 = vunpack.c.h.b16 %v1441
        %v1487 = vunpack.c.l.b16 %v1442
        %v1488 = vunpack.c.h.b16 %v1442
        %v1489 = vunpack.c.l.b16 %v1443
        %v1490 = vunpack.c.h.b16 %v1443
        %v1491 = vunpack.c.l.b16 %v1444
        %v1492 = vunpack.c.h.b16 %v1444
        %v1493 = vunpack.c.l.b16 %v1445
        %v1494 = vunpack.c.h.b16 %v1445
        %v1495 = vunpack.c.l.b16 %v1446
        %v1496 = vunpack.c.h.b16 %v1446
        %v1497 = vunpack.c.l.b16 %v1447
        %v1498 = vunpack.c.h.b16 %v1447
        %v1499 = vunpack.c.l.b16 %v1448
        %v1500 = vunpack.c.h.b16 %v1448
        %v1501 = vunpack.c.l.b16 %v1449
        %v1502 = vunpack.c.h.b16 %v1449
        %v1503 = vunpack.c.l.b16 %v1450
        %v1504 = vunpack.c.h.b16 %v1450
        %v1505 = vunpack.c.l.b16 %v1451
        %v1506 = vunpack.c.h.b16 %v1451
        %v1507 = vunpack.c.l.b16 %v1452
        %v1508 = vunpack.c.h.b16 %v1452
        %v1509 = vunpack.c.l.b16 %v1453
        %v1510 = vunpack.c.h.b16 %v1453
        %v1511 = vunpack.c.l.b16 %v1454
        %v1512 = vunpack.c.h.b16 %v1454
        %v1513 = vunpack.c.l.b16 %v1455
        %v1514 = vunpack.c.h.b16 %v1455
        %v1515 = vunpack.c.l.b16 %v1456
        %v1516 = vunpack.c.h.b16 %v1456
        %v1517 = vpack.c.b16 %v1487, %v1485
        %v1518 = vpack.c.b16 %v1488, %v1486
        %v1519 = vpack.c.b16 %v1491, %v1489
        %v1520 = vpack.c.b16 %v1492, %v1490
        %v1521 = vpack.c.b16 %v1495, %v1493
        %v1522 = vpack.c.b16 %v1496, %v1494
        %v1523 = vpack.c.b16 %v1499, %v1497
        %v1524 = vpack.c.b16 %v1500, %v1498
        %v1525 = vpack.c.b16 %v1503, %v1501
        %v1526 = vpack.c.b16 %v1504, %v1502
        %v1527 = vpack.c.b16 %v1507, %v1505
        %v1528 = vpack.c.b16 %v1508, %v1506
        %v1529 = vpack.c.b16 %v1511, %v1509
        %v1530 = vpack.c.b16 %v1512, %v1510
        %v1531 = vpack.c.b16 %v1515, %v1513
        %v1532 = vpack.c.b16 %v1516, %v1514
        %1549 = vmatprep.subr.bf16.mxu0 %v1518
        %1550 = vmatpush1.bf16.msra.mxu0 %v1517
        %1551 = vmatprep.subr.bf16.mxu0 %v1520
        %1552 = vmatpush1.bf16.msra.mxu0 %v1519
        %1553 = vmatprep.subr.bf16.mxu0 %v1522
        %1554 = vmatpush1.bf16.msra.mxu0 %v1521
        %1555 = vmatprep.subr.bf16.mxu0 %v1524
        %1556 = vmatpush1.bf16.msra.mxu0 %v1523
        %1557 = vmatprep.subr.bf16.mxu0 %v1526
        %1558 = vmatpush1.bf16.msra.mxu0 %v1525
        %1559 = vmatprep.subr.bf16.mxu0 %v1528
        %1560 = vmatpush1.bf16.msra.mxu0 %v1527
        %1561 = vmatprep.subr.bf16.mxu0 %v1530
        %1562 = vmatpush1.bf16.msra.mxu0 %v1529
        %1563 = vmatprep.subr.bf16.mxu0 %v1532
        %1564 = vmatpush1.bf16.msra.mxu0 %v1531
        %1565 = vmatprep.subr.bf16.mxu0 0
        %1566 = vmatpush1.bf16.msra.mxu0 0
        %1567 = vmatprep.subr.bf16.mxu0 0
        %1568 = vmatpush1.bf16.msra.mxu0 0
        %1569 = vmatprep.subr.bf16.mxu0 0
        %1570 = vmatpush1.bf16.msra.mxu0 0
        %1571 = vmatprep.subr.bf16.mxu0 0
        %1572 = vmatpush1.bf16.msra.mxu0 0
        %1573 = vmatprep.subr.bf16.mxu0 0
        %1574 = vmatpush1.bf16.msra.mxu0 0
        %1575 = vmatprep.subr.bf16.mxu0 0
        %1576 = vmatpush1.bf16.msra.mxu0 0
        %1577 = vmatprep.subr.bf16.mxu0 0
        %1578 = vmatpush1.bf16.msra.mxu0 0
        %1579 = vmatprep.subr.bf16.mxu0 0
        %1580 = vmatpush1.bf16.msra.mxu0 0
        %1581 = vmatprep.mubr.bf16.mxu0 0
        %1582 = vmatmul.mubr.bf16.gmra.mrb[0].mxu0 %v1433
        %v1583 = vpop.f32.mrb[0].mxu0
        %v1584 = vadd.f32 %v1462, %v1583
        %v1585 = vpop.f32.mrb[0].mxu0
        %v1586 = vadd.f32 %v1466, %v1585
        %v1587 = vpop.f32.mrb[0].mxu0
        %v1588 = vadd.f32 %v1462, %v1587
        %v1589 = vpop.f32.mrb[0].mxu0
        %v1590 = vadd.f32 %v1466, %v1589
        %1591 = vmatprep.mubr.bf16.mxu0 0
        %1592 = vmatmul.mubr.bf16.gmra.mrb[0].mxu0 %v1434
        %v1593 = vpop.f32.mrb[0].mxu0
        %v1594 = vadd.f32 %v1462, %v1593
        %v1595 = vpop.f32.mrb[0].mxu0
        %v1596 = vadd.f32 %v1466, %v1595
        %v1597 = vpop.f32.mrb[0].mxu0
        %v1598 = vadd.f32 %v1462, %v1597
        %v1599 = vpop.f32.mrb[0].mxu0
        %v1600 = vadd.f32 %v1466, %v1599
        %1601 = vmatprep.mubr.bf16.mxu0 0
        %1602 = vmatmul.mubr.bf16.gmra.mrb[0].mxu0 %v1435
        %v1603 = vpop.f32.mrb[0].mxu0
        %v1604 = vadd.f32 %v1462, %v1603
        %v1605 = vpop.f32.mrb[0].mxu0
        %v1606 = vadd.f32 %v1466, %v1605
        %v1607 = vpop.f32.mrb[0].mxu0
        %v1608 = vadd.f32 %v1462, %v1607
        %v1609 = vpop.f32.mrb[0].mxu0
        %v1610 = vadd.f32 %v1466, %v1609
        %1611 = vmatprep.mubr.bf16.mxu0 0
        %1612 = vmatmul.mubr.bf16.gmra.mrb[0].mxu0 %v1436
        %v1613 = vpop.f32.mrb[0].mxu0
        %v1614 = vadd.f32 %v1462, %v1613
        %v1615 = vpop.f32.mrb[0].mxu0
        %v1616 = vadd.f32 %v1466, %v1615
        %v1617 = vpop.f32.mrb[0].mxu0
        %v1618 = vadd.f32 %v1462, %v1617
        %v1619 = vpop.f32.mrb[0].mxu0
        %v1620 = vadd.f32 %v1466, %v1619
        %1621 = vmatprep.mubr.bf16.mxu0 0
        %1622 = vmatmul.mubr.bf16.gmra.mrb[0].mxu0 %v1437
        %v1623 = vpop.f32.mrb[0].mxu0
        %v1624 = vadd.f32 %v1462, %v1623
        %v1625 = vpop.f32.mrb[0].mxu0
        %v1626 = vadd.f32 %v1466, %v1625
        %v1627 = vpop.f32.mrb[0].mxu0
        %v1628 = vadd.f32 %v1462, %v1627
        %v1629 = vpop.f32.mrb[0].mxu0
        %v1630 = vadd.f32 %v1466, %v1629
        %1631 = vmatprep.mubr.bf16.mxu0 0
        %1632 = vmatmul.mubr.bf16.gmra.mrb[0].mxu0 %v1438
        %v1633 = vpop.f32.mrb[0].mxu0
        %v1634 = vadd.f32 %v1462, %v1633
        %v1635 = vpop.f32.mrb[0].mxu0
        %v1636 = vadd.f32 %v1466, %v1635
        %v1637 = vpop.f32.mrb[0].mxu0
        %v1638 = vadd.f32 %v1462, %v1637
        %v1639 = vpop.f32.mrb[0].mxu0
        %v1640 = vadd.f32 %v1466, %v1639
        %1641 = vmatprep.mubr.bf16.mxu0 0
        %1642 = vmatmul.mubr.bf16.gmra.mrb[0].mxu0 %v1439
        %v1643 = vpop.f32.mrb[0].mxu0
        %v1644 = vadd.f32 %v1462, %v1643
        %v1645 = vpop.f32.mrb[0].mxu0
        %v1646 = vadd.f32 %v1466, %v1645
        %v1647 = vpop.f32.mrb[0].mxu0
        %v1648 = vadd.f32 %v1462, %v1647
        %v1649 = vpop.f32.mrb[0].mxu0
        %v1650 = vadd.f32 %v1466, %v1649
        %1651 = vmatprep.mubr.bf16.mxu0 0
        %1652 = vmatmul.mubr.bf16.gmra.mrb[0].mxu0 %v1440
        %v1653 = vpop.f32.mrb[0].mxu0
        %v1654 = vadd.f32 %v1462, %v1653
        %v1655 = vpop.f32.mrb[0].mxu0
        %v1656 = vadd.f32 %v1466, %v1655
        %v1657 = vpop.f32.mrb[0].mxu0
        %v1658 = vadd.f32 %v1462, %v1657
        %v1659 = vpop.f32.mrb[0].mxu0
        %v1660 = vadd.f32 %v1466, %v1659
        %1661 = vdwg.mxu0
        %v1662 = vmax.f32 %v1584, 0.0
        %v1663 = vmax.f32 %v1586, 0.0
        %v1664 = vmax.f32 %v1588, 0.0
        %v1665 = vmax.f32 %v1590, 0.0
        %v1666 = vmax.f32 %v1594, 0.0
        %v1667 = vmax.f32 %v1596, 0.0
        %v1668 = vmax.f32 %v1598, 0.0
        %v1669 = vmax.f32 %v1600, 0.0
        %v1670 = vmax.f32 %v1604, 0.0
        %v1671 = vmax.f32 %v1606, 0.0
        %v1672 = vmax.f32 %v1608, 0.0
        %v1673 = vmax.f32 %v1610, 0.0
        %v1674 = vmax.f32 %v1614, 0.0
        %v1675 = vmax.f32 %v1616, 0.0
        %v1676 = vmax.f32 %v1618, 0.0
        %v1677 = vmax.f32 %v1620, 0.0
        %v1678 = vmax.f32 %v1624, 0.0
        %v1679 = vmax.f32 %v1626, 0.0
        %v1680 = vmax.f32 %v1628, 0.0
        %v1681 = vmax.f32 %v1630, 0.0
        %v1682 = vmax.f32 %v1634, 0.0
        %v1683 = vmax.f32 %v1636, 0.0
        %v1684 = vmax.f32 %v1638, 0.0
        %v1685 = vmax.f32 %v1640, 0.0
        %v1686 = vmax.f32 %v1644, 0.0
        %v1687 = vmax.f32 %v1646, 0.0
        %v1688 = vmax.f32 %v1648, 0.0
        %v1689 = vmax.f32 %v1650, 0.0
        %v1690 = vmax.f32 %v1654, 0.0
        %v1691 = vmax.f32 %v1656, 0.0
        %v1692 = vmax.f32 %v1658, 0.0
        %v1693 = vmax.f32 %v1660, 0.0
        %v1694 = vpack.c.bf16 %v1664, %v1662
        %v1695 = vpack.c.bf16 %v1665, %v1663
        %v1696 = vpack.c.bf16 %v1668, %v1666
        %v1697 = vpack.c.bf16 %v1669, %v1667
        %v1698 = vpack.c.bf16 %v1672, %v1670
        %v1699 = vpack.c.bf16 %v1673, %v1671
        %v1700 = vpack.c.bf16 %v1676, %v1674
        %v1701 = vpack.c.bf16 %v1677, %v1675
        %v1702 = vpack.c.bf16 %v1680, %v1678
        %v1703 = vpack.c.bf16 %v1681, %v1679
        %v1704 = vpack.c.bf16 %v1684, %v1682
        %v1705 = vpack.c.bf16 %v1685, %v1683
        %v1706 = vpack.c.bf16 %v1688, %v1686
        %v1707 = vpack.c.bf16 %v1689, %v1687
        %v1708 = vpack.c.bf16 %v1692, %v1690
        %v1709 = vpack.c.bf16 %v1693, %v1691
        %v1710 = vld [vmem:[#allocation11] sm:$0xff]
        %v1711 = vld [vmem:[#allocation11 + $0x8] sm:$0xff]
        %v1712 = vld [vmem:[#allocation11 + $0x10] sm:$0xff]
        %v1713 = vld [vmem:[#allocation11 + $0x18] sm:$0xff]
        %v1714 = vld [vmem:[#allocation11 + $0x20] sm:$0xff]
        %v1715 = vld [vmem:[#allocation11 + $0x28] sm:$0xff]
        %v1716 = vld [vmem:[#allocation11 + $0x30] sm:$0xff]
        %v1717 = vld [vmem:[#allocation11 + $0x38] sm:$0xff]
        %v1718 = vld [vmem:[#allocation11 + $0x40] sm:$0xff]
        %v1719 = vld [vmem:[#allocation11 + $0x48] sm:$0xff]
        %v1720 = vld [vmem:[#allocation11 + $0x50] sm:$0xff]
        %v1721 = vld [vmem:[#allocation11 + $0x58] sm:$0xff]
        %v1722 = vld [vmem:[#allocation11 + $0x60] sm:$0xff]
        %v1723 = vld [vmem:[#allocation11 + $0x68] sm:$0xff]
        %v1724 = vld [vmem:[#allocation11 + $0x70] sm:$0xff]
        %v1725 = vld [vmem:[#allocation11 + $0x78] sm:$0xff]
        %v1726 = vld [vmem:[#allocation11 + $0x80] sm:$0xff]
        %v1727 = vld [vmem:[#allocation11 + $0x88] sm:$0xff]
        %v1728 = vld [vmem:[#allocation11 + $0x90] sm:$0xff]
        %v1729 = vld [vmem:[#allocation11 + $0x98] sm:$0xff]
        %v1730 = vld [vmem:[#allocation11 + $0xa0] sm:$0xff]
        %v1731 = vld [vmem:[#allocation11 + $0xa8] sm:$0xff]
        %v1732 = vld [vmem:[#allocation11 + $0xb0] sm:$0xff]
        %v1733 = vld [vmem:[#allocation11 + $0xb8] sm:$0xff]
        %v1734 = vld [vmem:[#allocation11 + $0xc0] sm:$0xff]
        %v1735 = vld [vmem:[#allocation11 + $0xc8] sm:$0xff]
        %v1736 = vld [vmem:[#allocation11 + $0xd0] sm:$0xff]
        %v1737 = vld [vmem:[#allocation11 + $0xd8] sm:$0xff]
        %v1738 = vld [vmem:[#allocation11 + $0xe0] sm:$0xff]
        %v1739 = vld [vmem:[#allocation11 + $0xe8] sm:$0xff]
        %v1740 = vld [vmem:[#allocation11 + $0xf0] sm:$0xff]
        %v1741 = vld [vmem:[#allocation11 + $0xf8] sm:$0xff]
        %v1742 = vld [vmem:[%s10] sm:$0x3]
        %v1744 = vlaneseq
        %v1745 = vshrl.u32 %v1744, 7
        %v1746 = vsub.s32 0, %v1745
        %v1747 = vrot.slane %v1742, %v1746
        %v1748 = vlaneseq
        %v1749 = vshrl.u32 %v1748, 7
        %v1750 = vsub.s32 1, %v1749
        %v1751 = vrot.slane %v1742, %v1750
        %v1786 = vunpack.c.l.b16 %v1710
        %v1787 = vunpack.c.h.b16 %v1710
        %v1788 = vunpack.c.l.b16 %v1711
        %v1789 = vunpack.c.h.b16 %v1711
        %v1790 = vunpack.c.l.b16 %v1712
        %v1791 = vunpack.c.h.b16 %v1712
        %v1792 = vunpack.c.l.b16 %v1713
        %v1793 = vunpack.c.h.b16 %v1713
        %v1794 = vunpack.c.l.b16 %v1714
        %v1795 = vunpack.c.h.b16 %v1714
        %v1796 = vunpack.c.l.b16 %v1715
        %v1797 = vunpack.c.h.b16 %v1715
        %v1798 = vunpack.c.l.b16 %v1716
        %v1799 = vunpack.c.h.b16 %v1716
        %v1800 = vunpack.c.l.b16 %v1717
        %v1801 = vunpack.c.h.b16 %v1717
        %v1802 = vunpack.c.l.b16 %v1718
        %v1803 = vunpack.c.h.b16 %v1718
        %v1804 = vunpack.c.l.b16 %v1719
        %v1805 = vunpack.c.h.b16 %v1719
        %v1806 = vunpack.c.l.b16 %v1720
        %v1807 = vunpack.c.h.b16 %v1720
        %v1808 = vunpack.c.l.b16 %v1721
        %v1809 = vunpack.c.h.b16 %v1721
        %v1810 = vunpack.c.l.b16 %v1722
        %v1811 = vunpack.c.h.b16 %v1722
        %v1812 = vunpack.c.l.b16 %v1723
        %v1813 = vunpack.c.h.b16 %v1723
        %v1814 = vunpack.c.l.b16 %v1724
        %v1815 = vunpack.c.h.b16 %v1724
        %v1816 = vunpack.c.l.b16 %v1725
        %v1817 = vunpack.c.h.b16 %v1725
        %v1818 = vunpack.c.l.b16 %v1726
        %v1819 = vunpack.c.h.b16 %v1726
        %v1820 = vunpack.c.l.b16 %v1727
        %v1821 = vunpack.c.h.b16 %v1727
        %v1822 = vunpack.c.l.b16 %v1728
        %v1823 = vunpack.c.h.b16 %v1728
        %v1824 = vunpack.c.l.b16 %v1729
        %v1825 = vunpack.c.h.b16 %v1729
        %v1826 = vunpack.c.l.b16 %v1730
        %v1827 = vunpack.c.h.b16 %v1730
        %v1828 = vunpack.c.l.b16 %v1731
        %v1829 = vunpack.c.h.b16 %v1731
        %v1830 = vunpack.c.l.b16 %v1732
        %v1831 = vunpack.c.h.b16 %v1732
        %v1832 = vunpack.c.l.b16 %v1733
        %v1833 = vunpack.c.h.b16 %v1733
        %v1834 = vunpack.c.l.b16 %v1734
        %v1835 = vunpack.c.h.b16 %v1734
        %v1836 = vunpack.c.l.b16 %v1735
        %v1837 = vunpack.c.h.b16 %v1735
        %v1838 = vunpack.c.l.b16 %v1736
        %v1839 = vunpack.c.h.b16 %v1736
        %v1840 = vunpack.c.l.b16 %v1737
        %v1841 = vunpack.c.h.b16 %v1737
        %v1842 = vunpack.c.l.b16 %v1738
        %v1843 = vunpack.c.h.b16 %v1738
        %v1844 = vunpack.c.l.b16 %v1739
        %v1845 = vunpack.c.h.b16 %v1739
        %v1846 = vunpack.c.l.b16 %v1740
        %v1847 = vunpack.c.h.b16 %v1740
        %v1848 = vunpack.c.l.b16 %v1741
        %v1849 = vunpack.c.h.b16 %v1741
        %v1850 = vpack.c.b16 %v1788, %v1786
        %v1851 = vpack.c.b16 %v1789, %v1787
        %v1852 = vpack.c.b16 %v1792, %v1790
        %v1853 = vpack.c.b16 %v1793, %v1791
        %v1854 = vpack.c.b16 %v1796, %v1794
        %v1855 = vpack.c.b16 %v1797, %v1795
        %v1856 = vpack.c.b16 %v1800, %v1798
        %v1857 = vpack.c.b16 %v1801, %v1799
        %v1858 = vpack.c.b16 %v1804, %v1802
        %v1859 = vpack.c.b16 %v1805, %v1803
        %v1860 = vpack.c.b16 %v1808, %v1806
        %v1861 = vpack.c.b16 %v1809, %v1807
        %v1862 = vpack.c.b16 %v1812, %v1810
        %v1863 = vpack.c.b16 %v1813, %v1811
        %v1864 = vpack.c.b16 %v1816, %v1814
        %v1865 = vpack.c.b16 %v1817, %v1815
        %v1866 = vpack.c.b16 %v1820, %v1818
        %v1867 = vpack.c.b16 %v1821, %v1819
        %v1868 = vpack.c.b16 %v1824, %v1822
        %v1869 = vpack.c.b16 %v1825, %v1823
        %v1870 = vpack.c.b16 %v1828, %v1826
        %v1871 = vpack.c.b16 %v1829, %v1827
        %v1872 = vpack.c.b16 %v1832, %v1830
        %v1873 = vpack.c.b16 %v1833, %v1831
        %v1874 = vpack.c.b16 %v1836, %v1834
        %v1875 = vpack.c.b16 %v1837, %v1835
        %v1876 = vpack.c.b16 %v1840, %v1838
        %v1877 = vpack.c.b16 %v1841, %v1839
        %v1878 = vpack.c.b16 %v1844, %v1842
        %v1879 = vpack.c.b16 %v1845, %v1843
        %v1880 = vpack.c.b16 %v1848, %v1846
        %v1881 = vpack.c.b16 %v1849, %v1847
        %1914 = vmatprep.subr.bf16.mxu0 %v1851
        %1915 = vmatpush1.bf16.msra.mxu0 %v1850
        %1916 = vmatprep.subr.bf16.mxu0 %v1853
        %1917 = vmatpush1.bf16.msra.mxu0 %v1852
        %1918 = vmatprep.subr.bf16.mxu0 %v1855
        %1919 = vmatpush1.bf16.msra.mxu0 %v1854
        %1920 = vmatprep.subr.bf16.mxu0 %v1857
        %1921 = vmatpush1.bf16.msra.mxu0 %v1856
        %1922 = vmatprep.subr.bf16.mxu0 %v1859
        %1923 = vmatpush1.bf16.msra.mxu0 %v1858
        %1924 = vmatprep.subr.bf16.mxu0 %v1861
        %1925 = vmatpush1.bf16.msra.mxu0 %v1860
        %1926 = vmatprep.subr.bf16.mxu0 %v1863
        %1927 = vmatpush1.bf16.msra.mxu0 %v1862
        %1928 = vmatprep.subr.bf16.mxu0 %v1865
        %1929 = vmatpush1.bf16.msra.mxu0 %v1864
        %1930 = vmatprep.subr.bf16.mxu0 %v1867
        %1931 = vmatpush1.bf16.msra.mxu0 %v1866
        %1932 = vmatprep.subr.bf16.mxu0 %v1869
        %1933 = vmatpush1.bf16.msra.mxu0 %v1868
        %1934 = vmatprep.subr.bf16.mxu0 %v1871
        %1935 = vmatpush1.bf16.msra.mxu0 %v1870
        %1936 = vmatprep.subr.bf16.mxu0 %v1873
        %1937 = vmatpush1.bf16.msra.mxu0 %v1872
        %1938 = vmatprep.subr.bf16.mxu0 %v1875
        %1939 = vmatpush1.bf16.msra.mxu0 %v1874
        %1940 = vmatprep.subr.bf16.mxu0 %v1877
        %1941 = vmatpush1.bf16.msra.mxu0 %v1876
        %1942 = vmatprep.subr.bf16.mxu0 %v1879
        %1943 = vmatpush1.bf16.msra.mxu0 %v1878
        %1944 = vmatprep.subr.bf16.mxu0 %v1881
        %1945 = vmatpush1.bf16.msra.mxu0 %v1880
        %1946 = vmatprep.mubr.bf16.mxu0 %v1695
        %1947 = vmatmul.mubr.bf16.gmra.mrb[0].mxu0 %v1694
        %v1948 = vpop.f32.mrb[0].mxu0
        %v1949 = vadd.f32 %v1747, %v1948
        %v1950 = vpop.f32.mrb[0].mxu0
        %v1951 = vadd.f32 %v1751, %v1950
        %v1952 = vpop.f32.mrb[0].mxu0
        %v1953 = vadd.f32 %v1747, %v1952
        %v1954 = vpop.f32.mrb[0].mxu0
        %v1955 = vadd.f32 %v1751, %v1954
        %1956 = vmatprep.mubr.bf16.mxu0 %v1697
        %1957 = vmatmul.mubr.bf16.gmra.mrb[0].mxu0 %v1696
        %v1958 = vpop.f32.mrb[0].mxu0
        %v1959 = vadd.f32 %v1747, %v1958
        %v1960 = vpop.f32.mrb[0].mxu0
        %v1961 = vadd.f32 %v1751, %v1960
        %v1962 = vpop.f32.mrb[0].mxu0
        %v1963 = vadd.f32 %v1747, %v1962
        %v1964 = vpop.f32.mrb[0].mxu0
        %v1965 = vadd.f32 %v1751, %v1964
        %1966 = vmatprep.mubr.bf16.mxu0 %v1699
        %1967 = vmatmul.mubr.bf16.gmra.mrb[0].mxu0 %v1698
        %v1968 = vpop.f32.mrb[0].mxu0
        %v1969 = vadd.f32 %v1747, %v1968
        %v1970 = vpop.f32.mrb[0].mxu0
        %v1971 = vadd.f32 %v1751, %v1970
        %v1972 = vpop.f32.mrb[0].mxu0
        %v1973 = vadd.f32 %v1747, %v1972
        %v1974 = vpop.f32.mrb[0].mxu0
        %v1975 = vadd.f32 %v1751, %v1974
        %1976 = vmatprep.mubr.bf16.mxu0 %v1701
        %1977 = vmatmul.mubr.bf16.gmra.mrb[0].mxu0 %v1700
        %v1978 = vpop.f32.mrb[0].mxu0
        %v1979 = vadd.f32 %v1747, %v1978
        %v1980 = vpop.f32.mrb[0].mxu0
        %v1981 = vadd.f32 %v1751, %v1980
        %v1982 = vpop.f32.mrb[0].mxu0
        %v1983 = vadd.f32 %v1747, %v1982
        %v1984 = vpop.f32.mrb[0].mxu0
        %v1985 = vadd.f32 %v1751, %v1984
        %1986 = vmatprep.mubr.bf16.mxu0 %v1703
        %1987 = vmatmul.mubr.bf16.gmra.mrb[0].mxu0 %v1702
        %v1988 = vpop.f32.mrb[0].mxu0
        %v1989 = vadd.f32 %v1747, %v1988
        %v1990 = vpop.f32.mrb[0].mxu0
        %v1991 = vadd.f32 %v1751, %v1990
        %v1992 = vpop.f32.mrb[0].mxu0
        %v1993 = vadd.f32 %v1747, %v1992
        %v1994 = vpop.f32.mrb[0].mxu0
        %v1995 = vadd.f32 %v1751, %v1994
        %1996 = vmatprep.mubr.bf16.mxu0 %v1705
        %1997 = vmatmul.mubr.bf16.gmra.mrb[0].mxu0 %v1704
        %v1998 = vpop.f32.mrb[0].mxu0
        %v1999 = vadd.f32 %v1747, %v1998
        %v2000 = vpop.f32.mrb[0].mxu0
        %v2001 = vadd.f32 %v1751, %v2000
        %v2002 = vpop.f32.mrb[0].mxu0
        %v2003 = vadd.f32 %v1747, %v2002
        %v2004 = vpop.f32.mrb[0].mxu0
        %v2005 = vadd.f32 %v1751, %v2004
        %2006 = vmatprep.mubr.bf16.mxu0 %v1707
        %2007 = vmatmul.mubr.bf16.gmra.mrb[0].mxu0 %v1706
        %v2008 = vpop.f32.mrb[0].mxu0
        %v2009 = vadd.f32 %v1747, %v2008
        %v2010 = vpop.f32.mrb[0].mxu0
        %v2011 = vadd.f32 %v1751, %v2010
        %v2012 = vpop.f32.mrb[0].mxu0
        %v2013 = vadd.f32 %v1747, %v2012
        %v2014 = vpop.f32.mrb[0].mxu0
        %v2015 = vadd.f32 %v1751, %v2014
        %2016 = vmatprep.mubr.bf16.mxu0 %v1709
        %2017 = vmatmul.mubr.bf16.gmra.mrb[0].mxu0 %v1708
        %v2018 = vpop.f32.mrb[0].mxu0
        %v2019 = vadd.f32 %v1747, %v2018
        %v2020 = vpop.f32.mrb[0].mxu0
        %v2021 = vadd.f32 %v1751, %v2020
        %v2022 = vpop.f32.mrb[0].mxu0
        %v2023 = vadd.f32 %v1747, %v2022
        %v2024 = vpop.f32.mrb[0].mxu0
        %v2025 = vadd.f32 %v1751, %v2024
        %2026 = vdwg.mxu0
        %v2027 = vtanh.pop %v1949
        %v2028 = vtanh.pop %v1951
        %v2029 = vtanh.pop %v1953
        %v2030 = vtanh.pop %v1955
        %v2031 = vtanh.pop %v1959
        %v2032 = vtanh.pop %v1961
        %v2033 = vtanh.pop %v1963
        %v2034 = vtanh.pop %v1965
        %v2035 = vtanh.pop %v1969
        %v2036 = vtanh.pop %v1971
        %v2037 = vtanh.pop %v1973
        %v2038 = vtanh.pop %v1975
        %v2039 = vtanh.pop %v1979
        %v2040 = vtanh.pop %v1981
        %v2041 = vtanh.pop %v1983
        %v2042 = vtanh.pop %v1985
        %v2043 = vtanh.pop %v1989
        %v2044 = vtanh.pop %v1991
        %v2045 = vtanh.pop %v1993
        %v2046 = vtanh.pop %v1995
        %v2047 = vtanh.pop %v1999
        %v2048 = vtanh.pop %v2001
        %v2049 = vtanh.pop %v2003
        %v2050 = vtanh.pop %v2005
        %v2051 = vtanh.pop %v2009
        %v2052 = vtanh.pop %v2011
        %v2053 = vtanh.pop %v2013
        %v2054 = vtanh.pop %v2015
        %v2055 = vtanh.pop %v2019
        %v2056 = vtanh.pop %v2021
        %v2057 = vtanh.pop %v2023
        %v2058 = vtanh.pop %v2025
        %2059 = vst [vmem:[%s536] sm:$0xff] %v2027
        %2060 = vst [vmem:[%s536 + $0x8] sm:$0xff] %v2028
        %2061 = vst [vmem:[%s536 + $0x10] sm:$0xff] %v2029
        %2062 = vst [vmem:[%s536 + $0x18] sm:$0xff] %v2030
        %2063 = vst [vmem:[%s536 + $0x20] sm:$0xff] %v2031
        %2064 = vst [vmem:[%s536 + $0x28] sm:$0xff] %v2032
        %2065 = vst [vmem:[%s536 + $0x30] sm:$0xff] %v2033
        %2066 = vst [vmem:[%s536 + $0x38] sm:$0xff] %v2034
        %2067 = vst [vmem:[%s536 + $0x40] sm:$0xff] %v2035
        %2068 = vst [vmem:[%s536 + $0x48] sm:$0xff] %v2036
        %2069 = vst [vmem:[%s536 + $0x50] sm:$0xff] %v2037
        %2070 = vst [vmem:[%s536 + $0x58] sm:$0xff] %v2038
        %2071 = vst [vmem:[%s536 + $0x60] sm:$0xff] %v2039
        %2072 = vst [vmem:[%s536 + $0x68] sm:$0xff] %v2040
        %2073 = vst [vmem:[%s536 + $0x70] sm:$0xff] %v2041
        %2074 = vst [vmem:[%s536 + $0x78] sm:$0xff] %v2042
        %2075 = vst [vmem:[%s536 + $0x80] sm:$0xff] %v2043
        %2076 = vst [vmem:[%s536 + $0x88] sm:$0xff] %v2044
        %2077 = vst [vmem:[%s536 + $0x90] sm:$0xff] %v2045
        %2078 = vst [vmem:[%s536 + $0x98] sm:$0xff] %v2046
        %2079 = vst [vmem:[%s536 + $0xa0] sm:$0xff] %v2047
        %2080 = vst [vmem:[%s536 + $0xa8] sm:$0xff] %v2048
        %2081 = vst [vmem:[%s536 + $0xb0] sm:$0xff] %v2049
        %2082 = vst [vmem:[%s536 + $0xb8] sm:$0xff] %v2050
        %2083 = vst [vmem:[%s536 + $0xc0] sm:$0xff] %v2051
        %2084 = vst [vmem:[%s536 + $0xc8] sm:$0xff] %v2052
        %2085 = vst [vmem:[%s536 + $0xd0] sm:$0xff] %v2053
        %2086 = vst [vmem:[%s536 + $0xd8] sm:$0xff] %v2054
        %2087 = vst [vmem:[%s536 + $0xe0] sm:$0xff] %v2055
        %2088 = vst [vmem:[%s536 + $0xe8] sm:$0xff] %v2056
        %2089 = vst [vmem:[%s536 + $0xf0] sm:$0xff] %v2057
        %2090 = vst [vmem:[%s536 + $0xf8] sm:$0xff] %v2058
        %2091 = vst [vmem:[%s543] sm:$0xff] %v1139
        %2092 = vst [vmem:[%s543 + $0x8] sm:$0xff] %v1142
        %2093 = vst [vmem:[%s543 + $0x10] sm:$0xff] %v1147
        %2094 = vst [vmem:[%s543 + $0x18] sm:$0xff] %v1150
        %2095 = vst [vmem:[%s543 + $0x20] sm:$0xff] %v1155
        %2096 = vst [vmem:[%s543 + $0x28] sm:$0xff] %v1158
        %2097 = vst [vmem:[%s543 + $0x30] sm:$0xff] %v1163
        %2098 = vst [vmem:[%s543 + $0x38] sm:$0xff] %v1166
        %2099 = vst [vmem:[%s543 + $0x40] sm:$0xff] %v1171
        %2100 = vst [vmem:[%s543 + $0x48] sm:$0xff] %v1174
        %2101 = vst [vmem:[%s543 + $0x50] sm:$0xff] %v1179
        %2102 = vst [vmem:[%s543 + $0x58] sm:$0xff] %v1182
        %2103 = vst [vmem:[%s543 + $0x60] sm:$0xff] %v1187
        %2104 = vst [vmem:[%s543 + $0x68] sm:$0xff] %v1190
        %2105 = vst [vmem:[%s543 + $0x70] sm:$0xff] %v1195
        %2106 = vst [vmem:[%s543 + $0x78] sm:$0xff] %v1198
        %2107 = vst [vmem:[%s550] sm:$0xff] %v1371
        %2108 = vst [vmem:[%s550 + $0x8] sm:$0xff] %v1374
        %2109 = vst [vmem:[%s550 + $0x10] sm:$0xff] %v1379
        %2110 = vst [vmem:[%s550 + $0x18] sm:$0xff] %v1382
        %2111 = vst [vmem:[%s550 + $0x20] sm:$0xff] %v1387
        %2112 = vst [vmem:[%s550 + $0x28] sm:$0xff] %v1390
        %2113 = vst [vmem:[%s550 + $0x30] sm:$0xff] %v1395
        %2114 = vst [vmem:[%s550 + $0x38] sm:$0xff] %v1398
        %2115 = vst [vmem:[%s550 + $0x40] sm:$0xff] %v1403
        %2116 = vst [vmem:[%s550 + $0x48] sm:$0xff] %v1406
        %2117 = vst [vmem:[%s550 + $0x50] sm:$0xff] %v1411
        %2118 = vst [vmem:[%s550 + $0x58] sm:$0xff] %v1414
        %2119 = vst [vmem:[%s550 + $0x60] sm:$0xff] %v1419
        %2120 = vst [vmem:[%s550 + $0x68] sm:$0xff] %v1422
        %2121 = vst [vmem:[%s550 + $0x70] sm:$0xff] %v1427
        %2122 = vst [vmem:[%s550 + $0x78] sm:$0xff] %v1430
        %s2123 = sand.u32 %s281, 1
        %s2124 = scalar_lea.sflag [#allocation4], %s2123
        %s2125 = sand.u32 %s281, 1
        %s2126 = smul.addr %s2125, 256
        %s2127 = scalar_lea.vmem [#allocation13], %s2126
        %s2128 = sand.u32 %s37, 1
        %s2129 = scalar_lea.sflag [#allocation15], %s2128
        %s2130 = sand.u32 %s307, 1
        %s2131 = smul.addr %s2130, 128
        %s2132 = scalar_lea.vmem [#allocation14], %s2131
        %s2133 = sand.u32 %s37, 1
        %s2134 = scalar_lea.sflag [#allocation15], %s2133
        %s2135 = sand.u32 %s333, 1
        %s2136 = smul.addr %s2135, 128
        %s2137 = scalar_lea.vmem [#allocation16], %s2136
        // Predicated region
        $region89: #{tpu_custom_call.1} parent=63 // pred_check
          %p2138 = pneg %p291
        $region90: #{tpu_custom_call.1} parent=63 // pred_check_branch
          %2140 = sbr.rel (%p2138) target = $region92
        $region91: #{tpu_custom_call.1} parent=63 // pred_region
          %s2141 = smul.u32 16, %s37
          %s2143 = ssub.s32 4096, 4096
          %2144 = vsyncadd %s2124, %s2143
          %s2145 = smul.addr %s2141, 2
          %s2146 = smul.addr %s2145, 128
          %s2147 = scalar_lea.hbm %s11, %s2146
          %s2148 = sshll.u32 %s2127, 4
          %s2149 = int_to_ptr.vmem [resolvable:$true] %s2148
          %2154 = dma.vmem_to_hbm [thread:$0]  %s2149, 4096, %s2147, %s2124, 256, 256, 16
        $region92: #{tpu_custom_call.1} parent=63 // pred_fallthru
          _
        // Predicated region
        $region93: #{tpu_custom_call.1} parent=63 // pred_check
          %p2155 = pneg %p317
        $region94: #{tpu_custom_call.1} parent=63 // pred_check_branch
          %2157 = sbr.rel (%p2155) target = $region96
        $region95: #{tpu_custom_call.1} parent=63 // pred_region
          %s2158 = smul.u32 16, %s37
          %s2160 = ssub.s32 2048, 2048
          %2161 = vsyncadd %s2129, %s2160
          %s2162 = smul.addr %s2158, 128
          %s2163 = scalar_lea.hbm %s12, %s2162
          %s2164 = sshll.u32 %s2132, 4
          %s2165 = int_to_ptr.vmem [resolvable:$true] %s2164
          %2170 = dma.vmem_to_hbm [thread:$0]  %s2165, 2048, %s2163, %s2129, 128, 128, 8
        $region96: #{tpu_custom_call.1} parent=63 // pred_fallthru
          _
        // Predicated region
        $region97: #{tpu_custom_call.1} parent=63 // pred_check
          %p2171 = pneg %p343
        $region98: #{tpu_custom_call.1} parent=63 // pred_check_branch
          %2173 = sbr.rel (%p2171) target = $region100
        $region99: #{tpu_custom_call.1} parent=63 // pred_region
          %s2174 = smul.u32 16, %s37
          %s2176 = ssub.s32 2048, 2048
          %2177 = vsyncadd %s2134, %s2176
          %s2178 = smul.addr %s2174, 128
          %s2179 = scalar_lea.hbm %s13, %s2178
          %s2180 = sshll.u32 %s2137, 4
          %s2181 = int_to_ptr.vmem [resolvable:$true] %s2180
          %2186 = dma.vmem_to_hbm [thread:$0]  %s2181, 2048, %s2179, %s2134, 128, 128, 8
        $region100: #{tpu_custom_call.1} parent=63 // pred_fallthru
          _
      $region64: #{tpu_custom_call.1} parent=5 // pred_fallthru
        _
      %p2187 = scmp.le.s32.totalorder 2, %s32
      // Predicated region
      $region101: #{tpu_custom_call.1} parent=5 // pred_check
        %p2188 = pneg %p2187
      $region102: #{tpu_custom_call.1} parent=5 // pred_check_branch
        %2190 = sbr.rel (%p2188) target = $region104
      $region103: #{tpu_custom_call.1} parent=5 // pred_region
        %s2191 = ssub.s32 %s32, 2
        // Predicated region
        $region105: #{tpu_custom_call.1} parent=103 // pred_check
          %p2192 = pneg %p297
        $region106: #{tpu_custom_call.1} parent=103 // pred_check_branch
          %2194 = sbr.rel (%p2192) target = $region108
        $region107: #{tpu_custom_call.1} parent=103 // pred_region
          %s2195 = sand.u32 %s282, 1
          %s2196 = scalar_lea.sflag [#allocation4], %s2195
          %s2197 = sand.u32 %s282, 1
          %s2198 = smul.addr %s2197, 256
          %s2199 = scalar_lea.vmem [#allocation13], %s2198
          %2200 = dma.done %s2196, 4096
        $region108: #{tpu_custom_call.1} parent=103 // pred_fallthru
          _
        // Predicated region
        $region109: #{tpu_custom_call.1} parent=103 // pred_check
          %p2201 = pneg %p323
        $region110: #{tpu_custom_call.1} parent=103 // pred_check_branch
          %2203 = sbr.rel (%p2201) target = $region112
        $region111: #{tpu_custom_call.1} parent=103 // pred_region
          %s2204 = sand.u32 %s38, 1
          %s2205 = scalar_lea.sflag [#allocation15], %s2204
          %s2206 = sand.u32 %s308, 1
          %s2207 = smul.addr %s2206, 128
          %s2208 = scalar_lea.vmem [#allocation14], %s2207
          %2209 = dma.done %s2205, 2048
        $region112: #{tpu_custom_call.1} parent=103 // pred_fallthru
          _
        // Predicated region
        $region113: #{tpu_custom_call.1} parent=103 // pred_check
          %p2210 = pneg %p349
        $region114: #{tpu_custom_call.1} parent=103 // pred_check_branch
          %2212 = sbr.rel (%p2210) target = $region116
        $region115: #{tpu_custom_call.1} parent=103 // pred_region
          %s2213 = sand.u32 %s38, 1
          %s2214 = scalar_lea.sflag [#allocation15], %s2213
          %s2215 = sand.u32 %s334, 1
          %s2216 = smul.addr %s2215, 128
          %s2217 = scalar_lea.vmem [#allocation16], %s2216
          %2218 = dma.done %s2214, 2048
        $region116: #{tpu_custom_call.1} parent=103 // pred_fallthru
          _
      $region104: #{tpu_custom_call.1} parent=5 // pred_fallthru
        _
    $region6: #{tpu_custom_call.1} parent=1 // loop_footer
      %s36 = sadd.s32 1, %s32
    $region7: #{tpu_custom_call.1} parent=1 // loop_footer_branch
      %31 = sbr.rel target = $region3
    $region8: #{tpu_custom_call.1} parent=1 // loop_exit
      _
    %2219 = vsyncpa [#allocation3], 1
    %s2220 = scalar_lea.sflag [#allocation3], 1
    %2221 = vsyncpa %s2220, 1
    %2222 = vsyncpa [#allocation6], 1
    %2223 = vsyncpa [#allocation9], 1
    %2224 = vsyncpa [#allocation12], 1
    %2225 = vsyncpa [#allocation4], 1
    %s2226 = scalar_lea.sflag [#allocation4], 1
    %2227 = vsyncpa %s2226, 1
    %2228 = vsyncpa [#allocation15], 1
    %s2229 = scalar_lea.sflag [#allocation15], 1
    %2230 = vsyncpa %s2229, 1

</llo_original>
